<compile_context>
chip_gen: v6e
topology: v6e:2x2x1
jax: 0.10.0
libtpu: 0.0.40
codegen_flags: <defaults>
</compile_context>

<pallas_src>
import functools

import jax
import jax.numpy as jnp
from jax.experimental import pallas as pl
from jax.experimental.pallas import tpu as pltpu

EPS = 1e-5


# --------------------------------------------------------------------------- helpers
def _const_spec(shape, index_map):
    """BlockSpec for a constant-index operand: never re-DMA'd, so single-buffer it."""
    try:
        return pl.BlockSpec(shape, index_map, pipeline_mode=pl.Buffered(1))
    except Exception:                      # older jax without pipeline_mode support
        return pl.BlockSpec(shape, index_map)


def _pick_row_block(H, W):
    """Row-block size: multiple of 8 (aligned sublane band slice), RB*W multiple of
    128 (lane-dense output blocks), dividing H; fall back to whole-image blocks."""
    cands = [d for d in range(8, H, 8) if H % d == 0 and (d * W) % 128 == 0]
    for d in cands:
        if d * W >= 512:                   # prefer >=512-wide stores (roofline)
            return d
    return cands[0] if cands else H


def _vmem_budget(est_bytes):
    """Cap the scoped-VMEM budget against v7x's 64 MiB physical VMEM (<=48 MiB),
    with headroom for compiler-internal scratch."""
    return int(min(48 * 2**20, max(32 * 2**20, 2 * est_bytes + 4 * 2**20)))


# --------------------------------------------------------------------------- kernels
def _conv1_stats_kernel(x_ref, w_ref, y_ref, stats_ref, xpad_ref, patch_ref,
                        *, H, W, RB, n_rb, Cin, Cout):
    """3x3 conv (stride 1, pad 1) over one row block + fused per-channel sum/sumsq.

    x_ref    : (1, Cin, H, W)    full image, resident across row blocks (f32 input)
    w_ref    : (Cout, 9*Cin)     im2col-packed weights (compute dtype)
    y_ref    : (1, Cout, RB*W)   conv output row block, lane-dense (compute dtype)
    stats_ref: (1, 1, Cout, 2)   [sum, sumsq] over this row block's pixels (f32)
    xpad_ref : VMEM (Cin, H+2, W+2)  padded image scratch, built at r == 0
    patch_ref: VMEM (9*Cin, RB*W)    im2col scratch
    """
    r = pl.program_id(1)

    @pl.when(r == 0)
    def _():
        z = xpad_ref.dtype
        # Zero only the 1-wide halo ring (once per image); interior overwritten below.
        xpad_ref[:, 0:1, :] = jnp.zeros((Cin, 1, W + 2), z)
        xpad_ref[:, H + 1:H + 2, :] = jnp.zeros((Cin, 1, W + 2), z)
        xpad_ref[:, :, 0:1] = jnp.zeros((Cin, H + 2, 1), z)
        xpad_ref[:, :, W + 1:W + 2] = jnp.zeros((Cin, H + 2, 1), z)
        xpad_ref[:, 1:H + 1, 1:W + 1] = x_ref[0].astype(z)     # single cast to MXU dtype

    if n_rb > 1:
        r0 = pl.multiple_of(r * RB, RB)                        # 8-aligned dynamic start
        band = xpad_ref[:, pl.ds(r0, RB + 2), :]               # (Cin, RB+2, W+2)
    else:
        band = xpad_ref[...]

    # im2col into a channels-major patch: every tap write is lane-dense (width RB*W).
    for kh in range(3):
        for kw in range(3):
            t = kh * 3 + kw
            tap = band[:, kh:kh + RB, kw:kw + W]               # (Cin, RB, W)
            patch_ref[t * Cin:(t + 1) * Cin, :] = tap.reshape(Cin, RB * W)

    # One fat matmul, K = 9*Cin, f32 accumulation; output last dim = pixels (lanes).
    yf = jnp.dot(w_ref[...], patch_ref[...], preferred_element_type=jnp.float32)
    yq = yf.astype(y_ref.dtype)
    y_ref[...] = yq.reshape(1, Cout, RB * W)

    # BN statistics fused into the conv epilogue, taken from the *stored* values so
    # mean/var match exactly the tensor normalized in the next phase.
    ys = yq.astype(jnp.float32)
    stats_ref[:, :, :, 0:1] = jnp.sum(ys, axis=1, keepdims=True).reshape(1, 1, Cout, 1)
    stats_ref[:, :, :, 1:2] = jnp.sum(ys * ys, axis=1, keepdims=True).reshape(1, 1, Cout, 1)


def _bn_relu_conv2_stats_kernel(y1_ref, s1_ref, b1_ref, w_ref, y2_ref, stats_ref,
                                hpad_ref, patch_ref, *, H, W, RB, n_rb, C):
    """BN1 affine + ReLU (once per image) -> 3x3 conv per row block -> fused stats.

    y1_ref   : (1, C, H*W)   conv1 output, full image resident (compute dtype)
    s1_ref   : (C, 1)        BN1 scale = gamma * rsqrt(var + eps)   (f32)
    b1_ref   : (C, 1)        BN1 shift = beta - mean * scale        (f32)
    w_ref    : (C, 9*C)      im2col-packed conv2 weights (compute dtype)
    y2_ref   : (1, C, RB*W)  conv2 output row block (compute dtype)
    stats_ref: (1, 1, C, 2)  [sum, sumsq] (f32)
    hpad_ref : VMEM (C, H+2, W+2)   zero-padded BN1 output, built at r == 0
    patch_ref: VMEM (9*C, RB*W)     im2col scratch
    """
    r = pl.program_id(1)

    @pl.when(r == 0)
    def _():
        z = hpad_ref.dtype
        # BN1 affine + ReLU in f32 over the whole (lane-dense) image, single downcast.
        h = jnp.maximum(y1_ref[0].astype(jnp.float32) * s1_ref[...] + b1_ref[...], 0.0)
        hpad_ref[:, 0:1, :] = jnp.zeros((C, 1, W + 2), z)
        hpad_ref[:, H + 1:H + 2, :] = jnp.zeros((C, 1, W + 2), z)
        hpad_ref[:, :, 0:1] = jnp.zeros((C, H + 2, 1), z)
        hpad_ref[:, :, W + 1:W + 2] = jnp.zeros((C, H + 2, 1), z)
        hpad_ref[:, 1:H + 1, 1:W + 1] = h.astype(z).reshape(C, H, W)

    if n_rb > 1:
        r0 = pl.multiple_of(r * RB, RB)
        band = hpad_ref[:, pl.ds(r0, RB + 2), :]
    else:
        band = hpad_ref[...]

    for kh in range(3):
        for kw in range(3):
            t = kh * 3 + kw
            tap = band[:, kh:kh + RB, kw:kw + W]
            patch_ref[t * C:(t + 1) * C, :] = tap.reshape(C, RB * W)

    yf = jnp.dot(w_ref[...], patch_ref[...], preferred_element_type=jnp.float32)
    yq = yf.astype(y2_ref.dtype)
    y2_ref[...] = yq.reshape(1, C, RB * W)

    ys = yq.astype(jnp.float32)
    stats_ref[:, :, :, 0:1] = jnp.sum(ys, axis=1, keepdims=True).reshape(1, 1, C, 1)
    stats_ref[:, :, :, 1:2] = jnp.sum(ys * ys, axis=1, keepdims=True).reshape(1, 1, C, 1)


# --------------------------------------------------------------------------- wrapper
def _bn_affine(stats, gamma, beta, count):
    """Reduce per-(image, row-block) [sum, sumsq] partials into BN (scale, shift)."""
    s = jnp.sum(stats[..., 0], axis=(0, 1))
    ss = jnp.sum(stats[..., 1], axis=(0, 1))
    mean = s / count
    var = ss / count - mean * mean                   # biased variance (training BN)
    scale = gamma.astype(jnp.float32) * jax.lax.rsqrt(var + EPS)
    shift = beta.astype(jnp.float32) - mean * scale
    return scale, shift


def basic_block(x, w1, g1, b1, w2, g2, b2, *, compute_dtype=jnp.float32):
    """BasicBlock forward (NCHW in/out), identity shortcut (stride=1, Cin == C)."""
    N, Cin, H, W = x.shape
    C = w1.shape[0]
    assert Cin == C, "identity-shortcut configuration only (see TODO above)"

    cd = compute_dtype
    bpe = jnp.dtype(cd).itemsize
    RB = _pick_row_block(H, W)
    n_rb = H // RB
    n_px = N * H * W

    x = x.astype(jnp.float32)
    # (Cout, Cin, 3, 3) -> (Cout, 3, 3, Cin) -> (Cout, 9*Cin): channels-major GEMM LHS.
    w1p = jnp.transpose(w1, (0, 2, 3, 1)).reshape(C, 9 * Cin).astype(cd)
    w2p = jnp.transpose(w2, (0, 2, 3, 1)).reshape(C, 9 * C).astype(cd)

    # Per-step VMEM footprint (double-buffered activation blocks + single-buffered
    # constants + scratch), used to size the scoped-VMEM budget per generation.
    vmem1 = (2 * Cin * H * W * 4 + C * 9 * Cin * bpe + 2 * C * RB * W * bpe
             + 2 * C * 2 * 4 + Cin * (H + 2) * (W + 2) * bpe + 9 * Cin * RB * W * bpe)
    vmem2 = (2 * C * H * W * bpe + 2 * C * 4 * 2 + C * 9 * C * bpe
             + 2 * C * RB * W * bpe + 2 * C * 2 * 4
             + C * (H + 2) * (W + 2) * bpe + 9 * C * RB * W * bpe)

    def cparams(est):
        return pltpu.CompilerParams(
            dimension_semantics=("parallel", "arbitrary"),
            vmem_limit_bytes=_vmem_budget(est))

    # ---- phase 1: conv1 + per-(image, row-block) BN1 partial statistics ---------
    y1, st1 = pl.pallas_call(
        functools.partial(_conv1_stats_kernel, H=H, W=W, RB=RB, n_rb=n_rb,
                          Cin=Cin, Cout=C),
        grid=(N, n_rb),
        in_specs=[
            pl.BlockSpec((1, Cin, H, W), lambda n, r: (n, 0, 0, 0)),   # resident/image
            _const_spec((C, 9 * Cin), lambda n, r: (0, 0)),
        ],
        out_specs=[
            pl.BlockSpec((1, C, RB * W), lambda n, r: (n, 0, r)),      # lane-dense
            pl.BlockSpec((1, 1, C, 2), lambda n, r: (n, r, 0, 0)),
        ],
        out_shape=[
            jax.ShapeDtypeStruct((N, C, H * W), cd),
            jax.ShapeDtypeStruct((N, n_rb, C, 2), jnp.float32),
        ],
        scratch_shapes=[
            pltpu.VMEM((Cin, H + 2, W + 2), cd),
            pltpu.VMEM((9 * Cin, RB * W), cd),
        ],
        compiler_params=cparams(vmem1),
    )(x, w1p)

    scale1, shift1 = _bn_affine(st1, g1, b1, n_px)

    # ---- phase 2: BN1 + ReLU + conv2 + per-(image, row-block) BN2 statistics ----
    y2, st2 = pl.pallas_call(
        functools.partial(_bn_relu_conv2_stats_kernel, H=H, W=W, RB=RB, n_rb=n_rb, C=C),
        grid=(N, n_rb),
        in_specs=[
            pl.BlockSpec((1, C, H * W), lambda n, r: (n, 0, 0)),       # resident/image
            _const_spec((C, 1), lambda n, r: (0, 0)),
            _const_spec((C, 1), lambda n, r: (0, 0)),
            _const_spec((C, 9 * C), lambda n, r: (0, 0)),
        ],
        out_specs=[
            pl.BlockSpec((1, C, RB * W), lambda n, r: (n, 0, r)),
            pl.BlockSpec((1, 1, C, 2), lambda n, r: (n, r, 0, 0)),
        ],
        out_shape=[
            jax.ShapeDtypeStruct((N, C, H * W), cd),
            jax.ShapeDtypeStruct((N, n_rb, C, 2), jnp.float32),
        ],
        scratch_shapes=[
            pltpu.VMEM((C, H + 2, W + 2), cd),
            pltpu.VMEM((9 * C, RB * W), cd),
        ],
        compiler_params=cparams(vmem2),
    )(y1, scale1.reshape(C, 1), shift1.reshape(C, 1), w2p)

    scale2, shift2 = _bn_affine(st2, g2, b2, n_px)

    # ---- phase 3: BN2 + identity shortcut + ReLU -- pure elementwise, left to XLA
    # so it fuses into one pass; NCHW is kept throughout so no transpose is needed.
    out = jnp.maximum(
        y2.astype(jnp.float32) * scale2.reshape(1, C, 1) + shift2.reshape(1, C, 1)
        + x.reshape(N, C, H * W), 0.0)
    return out.reshape(N, C, H, W)


# --------------------------------------------------------------------------- reference
def basic_block_reference(x, w1, g1, b1, w2, g2, b2):
    """Pure-JAX reference matching PyTorch training-mode forward (NCHW)."""
    def conv(y, w):
        return jax.lax.conv_general_dilated(
            y, w, window_strides=(1, 1), padding=((1, 1), (1, 1)),
            dimension_numbers=('NCHW', 'OIHW', 'NCHW'))

    def bn(y, g, b):
        mean = y.mean(axis=(0, 2, 3), keepdims=True)
        var = ((y - mean) ** 2).mean(axis=(0, 2, 3), keepdims=True)
        return ((y - mean) * jax.lax.rsqrt(var + EPS)
                * g.reshape(1, -1, 1, 1) + b.reshape(1, -1, 1, 1))

    out = jax.nn.relu(bn(conv(x, w1), g1, b1))
    out = bn(conv(out, w2), g2, b2)
    out = out + x                       # identity shortcut
    return jax.nn.relu(out)


# --------------------------------------------------------------------------- main
if __name__ == "__main__":
    # Config implied by the module: stride=1, in_channels == channels.
    N, C, H, W = 2, 4, 16, 16

    key = jax.random.PRNGKey(0)
    kx, k1, k2 = jax.random.split(key, 3)

    x = jax.random.normal(kx, (N, C, H, W), dtype=jnp.float32)
    w1 = 0.1 * jax.random.normal(k1, (C, C, 3, 3), dtype=jnp.float32)  # conv bias=False
    w2 = 0.1 * jax.random.normal(k2, (C, C, 3, 3), dtype=jnp.float32)
    g1 = jnp.ones((C,), jnp.float32)    # BatchNorm2d default init: weight=1, bias=0
    b1 = jnp.zeros((C,), jnp.float32)
    g2 = jnp.ones((C,), jnp.float32)
    b2 = jnp.zeros((C,), jnp.float32)

    ref = jax.block_until_ready(basic_block_reference(x, w1, g1, b1, w2, g2, b2))

    # Exact-semantics path: f32 operands everywhere.
    out_f32 = jax.block_until_ready(
        basic_block(x, w1, g1, b1, w2, g2, b2, compute_dtype=jnp.float32))
    if not jnp.allclose(out_f32, ref, atol=2e-4, rtol=2e-4):
        max_err = float(jnp.max(jnp.abs(out_f32 - ref)))
        raise AssertionError(f"f32 path mismatch vs reference, max abs err = {max_err}")

    # Reduced-precision MXU path: bf16 operands, f32 accumulation / BN math
    # (loose tolerance only because the operands are rounded to bf16).
    out_bf16 = jax.block_until_ready(
        basic_block(x, w1, g1, b1, w2, g2, b2, compute_dtype=jnp.bfloat16))
    if not jnp.allclose(out_bf16, ref, atol=1e-1, rtol=1e-1):
        max_err = float(jnp.max(jnp.abs(out_bf16 - ref)))
        raise AssertionError(f"bf16 path mismatch vs reference, max abs err = {max_err}")

    print("KERNEL_OK")
</pallas_src>

<mosaic_0001>
module attributes {stable_mosaic.version = 11 : i64} {
  func.func @_conv1_stats_kernel(%arg0: i32, %arg1: i32, %arg2: memref<1x4x16x16xf32, #tpu.memory_space<vmem>>, %arg3: memref<4x36xf32, #tpu.memory_space<vmem>>, %arg4: memref<1x4x128xf32, #tpu.memory_space<vmem>>, %arg5: memref<1x1x4x2xf32, #tpu.memory_space<vmem>>, %arg6: memref<4x18x18xf32, #tpu.memory_space<vmem>>, %arg7: memref<36x128xf32, #tpu.memory_space<vmem>>) attributes {dimension_semantics = [#tpu.dimension_semantics<parallel>, #tpu.dimension_semantics<arbitrary>], iteration_bounds = array<i64: 2, 2>, scalar_prefetch = 0 : i64, scratch_operands = 2 : i64, tpu.core_type = #tpu.core_type<tc>, window_params = [{transform_indices = @transform_0, window_bounds = array<i64: 1, 4, 16, 16>}, {pipeline_mode = #tpu.pipeline_mode<synchronous>, transform_indices = @transform_1, window_bounds = array<i64: 4, 36>}, {transform_indices = @transform_2, window_bounds = array<i64: 1, 4, 128>}, {transform_indices = @transform_3, window_bounds = array<i64: 1, 1, 4, 2>}]} {
    %c0_i32 = arith.constant 0 : i32
    %0 = arith.cmpi eq, %arg1, %c0_i32 : i32
    %1 = arith.extui %0 : i1 to i32
    %c0_i32_0 = arith.constant 0 : i32
    %2 = arith.cmpi ne, %1, %c0_i32_0 : i32
    scf.if %2 {
      %cst_28 = arith.constant 0.000000e+00 : f32
      %48 = vector.broadcast %cst_28 : f32 to vector<4x1x18xf32>
      %c0_29 = arith.constant 0 : index
      %c0_30 = arith.constant 0 : index
      %c0_31 = arith.constant 0 : index
      %49 = vector.load %arg6[%c0_29, %c0_30, %c0_31] : memref<4x18x18xf32, #tpu.memory_space<vmem>>, vector<4x1x18xf32>
      tpu.vector_store %arg6[%c0_29, %c0_30, %c0_31], %48 {strides = array<i32>} : memref<4x18x18xf32, #tpu.memory_space<vmem>>, vector<4x1x18xf32>,
      %cst_32 = arith.constant 0.000000e+00 : f32
      %50 = vector.broadcast %cst_32 : f32 to vector<4x1x18xf32>
      %c0_33 = arith.constant 0 : index
      %c17 = arith.constant 17 : index
      %c0_34 = arith.constant 0 : index
      %51 = vector.load %arg6[%c0_33, %c17, %c0_34] : memref<4x18x18xf32, #tpu.memory_space<vmem>>, vector<4x1x18xf32>
      tpu.vector_store %arg6[%c0_33, %c17, %c0_34], %50 {strides = array<i32>} : memref<4x18x18xf32, #tpu.memory_space<vmem>>, vector<4x1x18xf32>,
      %cst_35 = arith.constant 0.000000e+00 : f32
      %52 = vector.broadcast %cst_35 : f32 to vector<4x18x1xf32>
      %c0_36 = arith.constant 0 : index
      %c0_37 = arith.constant 0 : index
      %c0_38 = arith.constant 0 : index
      %53 = vector.load %arg6[%c0_36, %c0_37, %c0_38] : memref<4x18x18xf32, #tpu.memory_space<vmem>>, vector<4x18x1xf32>
      tpu.vector_store %arg6[%c0_36, %c0_37, %c0_38], %52 {strides = array<i32>} : memref<4x18x18xf32, #tpu.memory_space<vmem>>, vector<4x18x1xf32>,
      %cst_39 = arith.constant 0.000000e+00 : f32
      %54 = vector.broadcast %cst_39 : f32 to vector<4x18x1xf32>
      %c0_40 = arith.constant 0 : index
      %c0_41 = arith.constant 0 : index
      %c17_42 = arith.constant 17 : index
      %55 = vector.load %arg6[%c0_40, %c0_41, %c17_42] : memref<4x18x18xf32, #tpu.memory_space<vmem>>, vector<4x18x1xf32>
      tpu.vector_store %arg6[%c0_40, %c0_41, %c17_42], %54 {strides = array<i32>} : memref<4x18x18xf32, #tpu.memory_space<vmem>>, vector<4x18x1xf32>,
      %c0_43 = arith.constant 0 : index
      %c0_44 = arith.constant 0 : index
      %c0_45 = arith.constant 0 : index
      %c0_46 = arith.constant 0 : index
      %56 = vector.load %arg2[%c0_43, %c0_44, %c0_45, %c0_46] : memref<1x4x16x16xf32, #tpu.memory_space<vmem>>, vector<1x4x16x16xf32>
      %57 = vector.shape_cast %56 : vector<1x4x16x16xf32> to vector<4x16x16xf32>
      %c0_47 = arith.constant 0 : index
      %c1_48 = arith.constant 1 : index
      %c1_49 = arith.constant 1 : index
      %58 = vector.load %arg6[%c0_47, %c1_48, %c1_49] : memref<4x18x18xf32, #tpu.memory_space<vmem>>, vector<4x16x16xf32>
      tpu.vector_store %arg6[%c0_47, %c1_48, %c1_49], %57 {strides = array<i32>} : memref<4x18x18xf32, #tpu.memory_space<vmem>>, vector<4x16x16xf32>,
    } else {
    }
    %c8_i32 = arith.constant 8 : i32
    %3 = arith.muli %arg1, %c8_i32 : i32
    %4 = tpu.assume_multiple %3, 8 : i32
    %c0 = arith.constant 0 : index
    %5 = arith.index_cast %4 : i32 to index
    %c0_1 = arith.constant 0 : index
    %6 = vector.load %arg6[%c0, %5, %c0_1] : memref<4x18x18xf32, #tpu.memory_space<vmem>>, vector<4x10x18xf32>
    %7 = vector.extract_strided_slice %6 {offsets = [0, 0, 0], sizes = [4, 8, 16], strides = [1, 1, 1]} : vector<4x10x18xf32> to vector<4x8x16xf32>
    %8 = vector.shape_cast %7 : vector<4x8x16xf32> to vector<4x128xf32>
    %c0_2 = arith.constant 0 : index
    %c0_3 = arith.constant 0 : index
    %9 = vector.load %arg7[%c0_2, %c0_3] : memref<36x128xf32, #tpu.memory_space<vmem>>, vector<4x128xf32>
    tpu.vector_store %arg7[%c0_2, %c0_3], %8 {strides = array<i32>} : memref<36x128xf32, #tpu.memory_space<vmem>>, vector<4x128xf32>,
    %10 = vector.extract_strided_slice %6 {offsets = [0, 0, 1], sizes = [4, 8, 16], strides = [1, 1, 1]} : vector<4x10x18xf32> to vector<4x8x16xf32>
    %11 = vector.shape_cast %10 : vector<4x8x16xf32> to vector<4x128xf32>
    %c4 = arith.constant 4 : index
    %c0_4 = arith.constant 0 : index
    %12 = vector.load %arg7[%c4, %c0_4] : memref<36x128xf32, #tpu.memory_space<vmem>>, vector<4x128xf32>
    tpu.vector_store %arg7[%c4, %c0_4], %11 {strides = array<i32>} : memref<36x128xf32, #tpu.memory_space<vmem>>, vector<4x128xf32>,
    %13 = vector.extract_strided_slice %6 {offsets = [0, 0, 2], sizes = [4, 8, 16], strides = [1, 1, 1]} : vector<4x10x18xf32> to vector<4x8x16xf32>
    %14 = vector.shape_cast %13 : vector<4x8x16xf32> to vector<4x128xf32>
    %c8 = arith.constant 8 : index
    %c0_5 = arith.constant 0 : index
    %15 = vector.load %arg7[%c8, %c0_5] : memref<36x128xf32, #tpu.memory_space<vmem>>, vector<4x128xf32>
    tpu.vector_store %arg7[%c8, %c0_5], %14 {strides = array<i32>} : memref<36x128xf32, #tpu.memory_space<vmem>>, vector<4x128xf32>,
    %16 = vector.extract_strided_slice %6 {offsets = [0, 1, 0], sizes = [4, 8, 16], strides = [1, 1, 1]} : vector<4x10x18xf32> to vector<4x8x16xf32>
    %17 = vector.shape_cast %16 : vector<4x8x16xf32> to vector<4x128xf32>
    %c12 = arith.constant 12 : index
    %c0_6 = arith.constant 0 : index
    %18 = vector.load %arg7[%c12, %c0_6] : memref<36x128xf32, #tpu.memory_space<vmem>>, vector<4x128xf32>
    tpu.vector_store %arg7[%c12, %c0_6], %17 {strides = array<i32>} : memref<36x128xf32, #tpu.memory_space<vmem>>, vector<4x128xf32>,
    %19 = vector.extract_strided_slice %6 {offsets = [0, 1, 1], sizes = [4, 8, 16], strides = [1, 1, 1]} : vector<4x10x18xf32> to vector<4x8x16xf32>
    %20 = vector.shape_cast %19 : vector<4x8x16xf32> to vector<4x128xf32>
    %c16 = arith.constant 16 : index
    %c0_7 = arith.constant 0 : index
    %21 = vector.load %arg7[%c16, %c0_7] : memref<36x128xf32, #tpu.memory_space<vmem>>, vector<4x128xf32>
    tpu.vector_store %arg7[%c16, %c0_7], %20 {strides = array<i32>} : memref<36x128xf32, #tpu.memory_space<vmem>>, vector<4x128xf32>,
    %22 = vector.extract_strided_slice %6 {offsets = [0, 1, 2], sizes = [4, 8, 16], strides = [1, 1, 1]} : vector<4x10x18xf32> to vector<4x8x16xf32>
    %23 = vector.shape_cast %22 : vector<4x8x16xf32> to vector<4x128xf32>
    %c20 = arith.constant 20 : index
    %c0_8 = arith.constant 0 : index
    %24 = vector.load %arg7[%c20, %c0_8] : memref<36x128xf32, #tpu.memory_space<vmem>>, vector<4x128xf32>
    tpu.vector_store %arg7[%c20, %c0_8], %23 {strides = array<i32>} : memref<36x128xf32, #tpu.memory_space<vmem>>, vector<4x128xf32>,
    %25 = vector.extract_strided_slice %6 {offsets = [0, 2, 0], sizes = [4, 8, 16], strides = [1, 1, 1]} : vector<4x10x18xf32> to vector<4x8x16xf32>
    %26 = vector.shape_cast %25 : vector<4x8x16xf32> to vector<4x128xf32>
    %c24 = arith.constant 24 : index
    %c0_9 = arith.constant 0 : index
    %27 = vector.load %arg7[%c24, %c0_9] : memref<36x128xf32, #tpu.memory_space<vmem>>, vector<4x128xf32>
    tpu.vector_store %arg7[%c24, %c0_9], %26 {strides = array<i32>} : memref<36x128xf32, #tpu.memory_space<vmem>>, vector<4x128xf32>,
    %28 = vector.extract_strided_slice %6 {offsets = [0, 2, 1], sizes = [4, 8, 16], strides = [1, 1, 1]} : vector<4x10x18xf32> to vector<4x8x16xf32>
    %29 = vector.shape_cast %28 : vector<4x8x16xf32> to vector<4x128xf32>
    %c28 = arith.constant 28 : index
    %c0_10 = arith.constant 0 : index
    %30 = vector.load %arg7[%c28, %c0_10] : memref<36x128xf32, #tpu.memory_space<vmem>>, vector<4x128xf32>
    tpu.vector_store %arg7[%c28, %c0_10], %29 {strides = array<i32>} : memref<36x128xf32, #tpu.memory_space<vmem>>, vector<4x128xf32>,
    %31 = vector.extract_strided_slice %6 {offsets = [0, 2, 2], sizes = [4, 8, 16], strides = [1, 1, 1]} : vector<4x10x18xf32> to vector<4x8x16xf32>
    %32 = vector.shape_cast %31 : vector<4x8x16xf32> to vector<4x128xf32>
    %c32 = arith.constant 32 : index
    %c0_11 = arith.constant 0 : index
    %33 = vector.load %arg7[%c32, %c0_11] : memref<36x128xf32, #tpu.memory_space<vmem>>, vector<4x128xf32>
    tpu.vector_store %arg7[%c32, %c0_11], %32 {strides = array<i32>} : memref<36x128xf32, #tpu.memory_space<vmem>>, vector<4x128xf32>,
    %c0_12 = arith.constant 0 : index
    %c0_13 = arith.constant 0 : index
    %34 = vector.load %arg3[%c0_12, %c0_13] : memref<4x36xf32, #tpu.memory_space<vmem>>, vector<4x36xf32>
    %c0_14 = arith.constant 0 : index
    %c0_15 = arith.constant 0 : index
    %35 = vector.load %arg7[%c0_14, %c0_15] : memref<36x128xf32, #tpu.memory_space<vmem>>, vector<36x128xf32>
    %cst = arith.constant dense<0.000000e+00> : vector<4x128xf32>
    %36 = tpu.matmul %34, %35, %cst {dimension_numbers = #tpu.dot_dimension_numbers<[1], [0], [0], [1], [0, 0, 1, 1], [], []>} : vector<4x36xf32>, vector<36x128xf32>, vector<4x128xf32> -> vector<4x128xf32>
    %37 = vector.shape_cast %36 : vector<4x128xf32> to vector<1x4x128xf32>
    %c0_16 = arith.constant 0 : index
    %c0_17 = arith.constant 0 : index
    %c0_18 = arith.constant 0 : index
    %38 = vector.load %arg4[%c0_16, %c0_17, %c0_18] : memref<1x4x128xf32, #tpu.memory_space<vmem>>, vector<1x4x128xf32>
    tpu.vector_store %arg4[%c0_16, %c0_17, %c0_18], %37 {strides = array<i32>} : memref<1x4x128xf32, #tpu.memory_space<vmem>>, vector<1x4x128xf32>,
    %cst_19 = arith.constant dense<0.000000e+00> : vector<4xf32>
    %39 = vector.multi_reduction <add>, %36, %cst_19 [1] : vector<4x128xf32> to vector<4xf32>
    %40 = vector.shape_cast %39 : vector<4xf32> to vector<4x1xf32>
    %41 = vector.shape_cast %40 : vector<4x1xf32> to vector<1x1x4x1xf32>
    %c0_20 = arith.constant 0 : index
    %c0_21 = arith.constant 0 : index
    %c0_22 = arith.constant 0 : index
    %c0_23 = arith.constant 0 : index
    %42 = vector.load %arg5[%c0_20, %c0_21, %c0_22, %c0_23] : memref<1x1x4x2xf32, #tpu.memory_space<vmem>>, vector<1x1x4x1xf32>
    tpu.vector_store %arg5[%c0_20, %c0_21, %c0_22, %c0_23], %41 {strides = array<i32>} : memref<1x1x4x2xf32, #tpu.memory_space<vmem>>, vector<1x1x4x1xf32>,
    %43 = arith.mulf %36, %36 : vector<4x128xf32>
    %cst_24 = arith.constant dense<0.000000e+00> : vector<4xf32>
    %44 = vector.multi_reduction <add>, %43, %cst_24 [1] : vector<4x128xf32> to vector<4xf32>
    %45 = vector.shape_cast %44 : vector<4xf32> to vector<4x1xf32>
    %46 = vector.shape_cast %45 : vector<4x1xf32> to vector<1x1x4x1xf32>
    %c0_25 = arith.constant 0 : index
    %c0_26 = arith.constant 0 : index
    %c0_27 = arith.constant 0 : index
    %c1 = arith.constant 1 : index
    %47 = vector.load %arg5[%c0_25, %c0_26, %c0_27, %c1] : memref<1x1x4x2xf32, #tpu.memory_space<vmem>>, vector<1x1x4x1xf32>
    tpu.vector_store %arg5[%c0_25, %c0_26, %c0_27, %c1], %46 {strides = array<i32>} : memref<1x1x4x2xf32, #tpu.memory_space<vmem>>, vector<1x1x4x1xf32>,
    return
  }
  func.func @transform_0(%arg0: i32, %arg1: i32) -> (i32, i32, i32, i32) {
    %c0_i32 = arith.constant 0 : i32
    %c0_i32_0 = arith.constant 0 : i32
    %c0_i32_1 = arith.constant 0 : i32
    %c0_i32_2 = arith.constant 0 : i32
    return %arg0, %c0_i32, %c0_i32_0, %c0_i32_1 : i32, i32, i32, i32
  }
  func.func @transform_1(%arg0: i32, %arg1: i32) -> (i32, i32) {
    %c0_i32 = arith.constant 0 : i32
    %c0_i32_0 = arith.constant 0 : i32
    %c0_i32_1 = arith.constant 0 : i32
    return %c0_i32, %c0_i32_0 : i32, i32
  }
  func.func @transform_2(%arg0: i32, %arg1: i32) -> (i32, i32, i32) {
    %c0_i32 = arith.constant 0 : i32
    %c0_i32_0 = arith.constant 0 : i32
    return %arg0, %c0_i32, %arg1 : i32, i32, i32
  }
  func.func @transform_3(%arg0: i32, %arg1: i32) -> (i32, i32, i32, i32) {
    %c0_i32 = arith.constant 0 : i32
    %c0_i32_0 = arith.constant 0 : i32
    %c0_i32_1 = arith.constant 0 : i32
    return %arg0, %arg1, %c0_i32, %c0_i32_0 : i32, i32, i32, i32
  }
}

</mosaic_0001>

<llo_original>
// kernel: tpu_custom_call.1
$region0: #{tpu_custom_call.1}
  #allocation0 [shape = 'u32[]', space=smem, size = 0x4, offset = 0x4, fixed_abs, tag = 'smem constant byte address 0x4 - core index']
  #allocation1 [shape = 'u32[144,128]{1,0:T(1,128)}', space=vmem, size = 0x12000, scoped, tag = 'internal scratch']
  #allocation2 [shape = 'f32[4,18,18]{2,1,0:T(8,128)}', space=vmem, size = 0xc000, scoped, tag = 'scratch operand']
  #allocation3 [shape = 'f32[36,128]{1,0:T(8,128)}', space=vmem, size = 0x5000, scoped, tag = 'scratch operand']
  %s0 = inlined_call_operand.hbm [shape: f32[2,4,16,16], index: 0, kind: input, shape index: {}]
  %s1 = inlined_call_operand.hbm [shape: f32[4,36], index: 1, kind: input, shape index: {}]
  %s2 = inlined_call_operand.hbm [shape: f32[2,4,256], index: 2, kind: output, shape index: {0}]
  %s3 = inlined_call_operand.vmem [shape: f32[2,2,4,2], index: 3, kind: output, shape index: {1}]
  %4 = xla_tuple %s2, %s3
  %s5 = sld [smem:[#allocation0]]
  $region61: #{tpu_custom_call.1} parent=0
    _
  %s7 = ssub.s32 1, %s5
  %s8 = scalar_select 0, %s7, %s5
  $region1: #{tpu_custom_call.1} parent=0
    #allocation4 [shape = 'u8[65536]{0}', space=vmem, size = 0x10000, scoped, tag = 'input window, operand 0']
    #allocation5 [shape = 's32[2]{0}', space=sflag, size = 0x8, scoped, tag = 'scoped memory for tpu_custom_call.1']
    #allocation6 [shape = 's32[2]{0}', space=sflag, size = 0x8, scoped, tag = 'scoped memory for tpu_custom_call.1']
    #allocation7 [shape = 'u8[2048]{0}', space=vmem, size = 0x800, scoped, tag = 'input window, operand 1, single buffered']
    #allocation8 [shape = 's32[1]{0}', space=sflag, size = 0x4, scoped, tag = 'scoped memory for tpu_custom_call.1']
    #allocation9 [shape = 'u8[4096]{0}', space=vmem, size = 0x1000, scoped, tag = 'output window, operand 0']
    %9 = vsyncpa [#allocation5], 0
    %s10 = scalar_lea.sflag [#allocation5], 1
    %11 = vsyncpa %s10, 0
    %12 = vsyncpa [#allocation8], 0
    %13 = vsyncpa [#allocation6], 0
    %s14 = scalar_lea.sflag [#allocation6], 1
    %15 = vsyncpa %s14, 0
    loop: start=0, step=1, limit=6
    $region2: #{tpu_custom_call.1} parent=1 // loop_pre_header
      _
    $region3: #{tpu_custom_call.1} parent=1 // loop_header
      %s17 = sphi 0, %s21
      %p18 = scmp.ge.s32.totalorder %s17, 6
      %s24 = sphi 0, %s36
      %s25 = sphi 0, %s32
      %s26 = sphi 0, %s24
      %s27 = sphi 0, %s25
      %s28 = sphi 0, %s26
      %s29 = sphi 0, %s27
      %s39 = sphi 0, %s41
      %s42 = sphi 0, %s39
      %s43 = sphi 0, %s42
      %s59 = sphi 0, %s43
      %s63 = sphi 0, %s63
      %s65 = sphi 0, %s63
      %s66 = sphi 0, %s65
      %s80 = sphi 0, %s66
      %s88 = sphi 0, %s90
      %s91 = sphi 0, %s88
      %s92 = sphi 0, %s91
      %s108 = sphi 0, %s92
      %s116 = sphi 0, %s118
      %s119 = sphi 0, %s116
      %s120 = sphi 0, %s119
      %s136 = sphi 0, %s120
    $region4: #{tpu_custom_call.1} parent=1 // loop_header_branch
      %20 = sbr.rel (%p18) target = $region8
    $region5: #{tpu_custom_call.1} parent=1 // loop_body
      %s22 = ssub.s32 %s17, 1
      %s23 = ssub.s32 %s17, 2
      %s30 = sadd.s32 1, %s25
      %p31 = scmp.ge.s32.totalorder %s30, 2
      %s32 = scalar_select %p31, 0, %s30
      %s33 = sadd.s32 1, %s24
      %s34 = scalar_select %p31, %s33, %s24
      %p35 = scmp.ge.s32.totalorder %s34, 2
      %s36 = scalar_select %p35, 0, %s34
      %s37 = ssub.s32 %s24, %s36
      %p38 = scmp.eq.s32.totalorder %s37, 0
      %s40 = sadd.s32 %s39, 1
      %s41 = scalar_select %p38, %s39, %s40
      %p44 = pneg %p38
      %p45 = scmp.eq.s32.totalorder %s17, 3
      %p46 = por %p44, %p45
      %p47 = scmp.ne.s32.totalorder %s39, %s42
      %p48 = scmp.eq.s32.totalorder %s17, 0
      %p49 = por %p47, %p48
      %p50 = scmp.ne.s32.totalorder %s39, %s42
      %p51 = scmp.eq.s32.totalorder %s22, 3
      %p52 = por %p50, %p51
      %p53 = scmp.ne.s32.totalorder %s42, %s43
      %p54 = scmp.eq.s32.totalorder %s22, 0
      %p55 = por %p53, %p54
      %p56 = scmp.ne.s32.totalorder %s42, %s43
      %p57 = scmp.eq.s32.totalorder %s23, 3
      %p58 = por %p56, %p57
      %p60 = scmp.ne.s32.totalorder %s43, %s59
      %p61 = scmp.eq.s32.totalorder %s23, 0
      %p62 = por %p60, %p61
      %s64 = sadd.s32 %s63, 1
      %p67 = scmp.eq.s32.totalorder %s17, 3
      %p68 = scmp.ne.s32.totalorder %s63, %s65
      %p69 = scmp.eq.s32.totalorder %s17, 0
      %p70 = por %p68, %p69
      %p71 = scmp.ne.s32.totalorder %s63, %s65
      %p72 = scmp.eq.s32.totalorder %s22, 3
      %p73 = por %p71, %p72
      %p74 = scmp.ne.s32.totalorder %s65, %s66
      %p75 = scmp.eq.s32.totalorder %s22, 0
      %p76 = por %p74, %p75
      %p77 = scmp.ne.s32.totalorder %s65, %s66
      %p78 = scmp.eq.s32.totalorder %s23, 3
      %p79 = por %p77, %p78
      %p81 = scmp.ne.s32.totalorder %s66, %s80
      %p82 = scmp.eq.s32.totalorder %s23, 0
      %p83 = por %p81, %p82
      %s84 = ssub.s32 %s24, %s36
      %s85 = ssub.s32 %s25, %s32
      %s86 = sor.u32 %s84, %s85
      %p87 = scmp.eq.s32.totalorder %s86, 0
      %s89 = sadd.s32 %s88, 1
      %s90 = scalar_select %p87, %s88, %s89
      %p93 = pneg %p87
      %p94 = scmp.eq.s32.totalorder %s17, 3
      %p95 = por %p93, %p94
      %p96 = scmp.ne.s32.totalorder %s88, %s91
      %p97 = scmp.eq.s32.totalorder %s17, 0
      %p98 = por %p96, %p97
      %p99 = scmp.ne.s32.totalorder %s88, %s91
      %p100 = scmp.eq.s32.totalorder %s22, 3
      %p101 = por %p99, %p100
      %p102 = scmp.ne.s32.totalorder %s91, %s92
      %p103 = scmp.eq.s32.totalorder %s22, 0
      %p104 = por %p102, %p103
      %p105 = scmp.ne.s32.totalorder %s91, %s92
      %p106 = scmp.eq.s32.totalorder %s23, 3
      %p107 = por %p105, %p106
      %p109 = scmp.ne.s32.totalorder %s92, %s108
      %p110 = scmp.eq.s32.totalorder %s23, 0
      %p111 = por %p109, %p110
      %s112 = ssub.s32 %s24, %s36
      %s113 = ssub.s32 %s25, %s32
      %s114 = sor.u32 %s112, %s113
      %p115 = scmp.eq.s32.totalorder %s114, 0
      %s117 = sadd.s32 %s116, 1
      %s118 = scalar_select %p115, %s116, %s117
      %p121 = pneg %p115
      %p122 = scmp.eq.s32.totalorder %s17, 3
      %p123 = por %p121, %p122
      %p124 = scmp.ne.s32.totalorder %s116, %s119
      %p125 = scmp.eq.s32.totalorder %s17, 0
      %p126 = por %p124, %p125
      %p127 = scmp.ne.s32.totalorder %s116, %s119
      %p128 = scmp.eq.s32.totalorder %s22, 3
      %p129 = por %p127, %p128
      %p130 = scmp.ne.s32.totalorder %s119, %s120
      %p131 = scmp.eq.s32.totalorder %s22, 0
      %p132 = por %p130, %p131
      %p133 = scmp.ne.s32.totalorder %s119, %s120
      %p134 = scmp.eq.s32.totalorder %s23, 3
      %p135 = por %p133, %p134
      %p137 = scmp.ne.s32.totalorder %s120, %s136
      %p138 = scmp.eq.s32.totalorder %s23, 0
      %p139 = por %p137, %p138
      %p140 = scmp.le.s32.totalorder 1, %s17
      %p141 = scmp.lt.s32.totalorder %s17, 5
      %p142 = pnand %p140, %p141
      %p143 = pneg %p142
      // Predicated region
      $region9: #{tpu_custom_call.1} parent=5 // pred_check
        _
      $region10: #{tpu_custom_call.1} parent=5 // pred_check_branch
        %145 = sbr.rel (%p142) target = $region12
      $region11: #{tpu_custom_call.1} parent=5 // pred_region
        %s146 = ssub.s32 %s17, 1
        // Predicated region
        $region13: #{tpu_custom_call.1} parent=11 // pred_check
          %p147 = pneg %p76
        $region14: #{tpu_custom_call.1} parent=11 // pred_check_branch
          %149 = sbr.rel (%p147) target = $region16
        $region15: #{tpu_custom_call.1} parent=11 // pred_region
          %s151 = ssub.s32 64, 64
          %152 = vsyncadd [#allocation8], %s151
          %s154 = sshll.u32 [#allocation7], 4
          %s155 = int_to_ptr.vmem [resolvable:$true] %s154
          %157 = dma.hbm_to_vmem [thread:$0]  %s1, 64, %s155, [#allocation8]
        $region16: #{tpu_custom_call.1} parent=11 // pred_fallthru
          _
      $region12: #{tpu_custom_call.1} parent=5 // pred_fallthru
        _
      %p158 = scmp.lt.s32.totalorder %s17, 4
      // Predicated region
      $region17: #{tpu_custom_call.1} parent=5 // pred_check
        %p159 = pneg %p158
      $region18: #{tpu_custom_call.1} parent=5 // pred_check_branch
        %161 = sbr.rel (%p159) target = $region20
      $region19: #{tpu_custom_call.1} parent=5 // pred_region
        // Predicated region
        $region21: #{tpu_custom_call.1} parent=19 // pred_check
          %p162 = pneg %p49
        $region22: #{tpu_custom_call.1} parent=19 // pred_check_branch
          %164 = sbr.rel (%p162) target = $region24
        $region23: #{tpu_custom_call.1} parent=19 // pred_region
          %s165 = sand.u32 %s39, 1
          %s166 = scalar_lea.sflag [#allocation5], %s165
          %s167 = sand.u32 %s39, 1
          %s168 = smul.addr %s167, 64
          %s169 = scalar_lea.vmem [#allocation4], %s168
          %s171 = ssub.s32 1024, 1024
          %172 = vsyncadd %s166, %s171
          %s173 = smul.addr %s24, 8
          %s174 = smul.addr %s173, 128
          %s175 = scalar_lea.hbm %s0, %s174
          %s176 = sshll.u32 %s169, 4
          %s177 = int_to_ptr.vmem [resolvable:$true] %s176
          %182 = dma.hbm_to_vmem [thread:$0]  %s175, 1024, %s177, %s166, 128, 128, 8
        $region24: #{tpu_custom_call.1} parent=19 // pred_fallthru
          _
      $region20: #{tpu_custom_call.1} parent=5 // pred_fallthru
        _
      %p183 = scmp.le.s32.totalorder 1, %s17
      %p184 = scmp.lt.s32.totalorder %s17, 5
      %p185 = pnand %p183, %p184
      %p186 = pneg %p185
      // Predicated region
      $region25: #{tpu_custom_call.1} parent=5 // pred_check
        _
      $region26: #{tpu_custom_call.1} parent=5 // pred_check_branch
        %188 = sbr.rel (%p185) target = $region28
      $region27: #{tpu_custom_call.1} parent=5 // pred_region
        %s189 = ssub.s32 %s17, 1
        %s190 = sand.u32 %s42, 1
        %s191 = scalar_lea.sflag [#allocation5], %s190
        %s192 = sand.u32 %s42, 1
        %s193 = smul.addr %s192, 64
        %s194 = scalar_lea.vmem [#allocation4], %s193
        // Predicated region
        $region29: #{tpu_custom_call.1} parent=27 // pred_check
          %p195 = pneg %p55
        $region30: #{tpu_custom_call.1} parent=27 // pred_check_branch
          %197 = sbr.rel (%p195) target = $region32
        $region31: #{tpu_custom_call.1} parent=27 // pred_region
          %198 = dma.done %s191, 1024
        $region32: #{tpu_custom_call.1} parent=27 // pred_fallthru
          _
        // Predicated region
        $region33: #{tpu_custom_call.1} parent=27 // pred_check
          %p199 = pneg %p76
        $region34: #{tpu_custom_call.1} parent=27 // pred_check_branch
          %201 = sbr.rel (%p199) target = $region36
        $region35: #{tpu_custom_call.1} parent=27 // pred_region
          %202 = dma.done [#allocation8], 64
        $region36: #{tpu_custom_call.1} parent=27 // pred_fallthru
          _
        %s203 = sand.u32 %s42, 1
        %s204 = scalar_lea.sflag [#allocation5], %s203
        %s205 = sand.u32 %s42, 1
        %s206 = smul.addr %s205, 64
        %s207 = scalar_lea.vmem [#allocation4], %s206
        %p208 = pneg %p55
        %p209 = pneg %p52
        %p210 = pneg %p76
        %p211 = pneg %p73
        %p212 = pneg %p104
        %p213 = pneg %p101
        %s214 = sand.u32 %s91, 1
        %s215 = scalar_lea.sflag [#allocation6], %s214
        %s216 = sand.u32 %s91, 1
        %s217 = smul.addr %s216, 4
        %s218 = scalar_lea.vmem [#allocation9], %s217
        %p219 = pneg %p132
        %p220 = pneg %p129
        %p221 = scmp.lt.s32.totalorder %s26, 1
        %s222 = scalar_select %p221, %s26, 1
        %p223 = scmp.lt.s32.totalorder %s27, 1
        %s224 = scalar_select %p223, %s27, 1
        %s225 = smul.addr %s222, 2
        %s226 = sadd.s32 %s224, %s225
        %s227 = smul.addr %s226, 4
        %s228 = scalar_lea.vmem %s3, %s227
        %p229 = scmp.lt.s32.totalorder %s26, 1
        %s230 = scalar_select %p229, %s26, 1
        %p231 = scmp.lt.s32.totalorder %s27, 1
        %s232 = scalar_select %p231, %s27, 1
        %s233 = smul.addr %s230, 2
        %s234 = sadd.s32 %s232, %s233
        %s235 = smul.addr %s234, 4
        %s236 = scalar_lea.vmem %s3, %s235
        %p237 = scmp.eq.s32.totalorder %s27, 0
        // Predicated region
        $region37: #{tpu_custom_call.1} parent=27 // pred_check
          %p238 = pneg %p237
        $region38: #{tpu_custom_call.1} parent=27 // pred_check_branch
          %240 = sbr.rel (%p238) target = $region40
        $region39: #{tpu_custom_call.1} parent=27 // pred_region
          %vm241 = vcmask 139264
          %242 = vst.msk [vmem:[#allocation2] sm:$0x1] %vm241, 0.0
          %243 = vst.msk [vmem:[#allocation2 + $0x18] sm:$0x1] %vm241, 0.0
          %244 = vst.msk [vmem:[#allocation2 + $0x30] sm:$0x1] %vm241, 0.0
          %245 = vst.msk [vmem:[#allocation2 + $0x48] sm:$0x1] %vm241, 0.0
          %246 = vst.msk [vmem:[#allocation2 + $0x11] sm:$0x1] %vm241, 0.0
          %247 = vst.msk [vmem:[#allocation2 + $0x29] sm:$0x1] %vm241, 0.0
          %248 = vst.msk [vmem:[#allocation2 + $0x41] sm:$0x1] %vm241, 0.0
          %249 = vst.msk [vmem:[#allocation2 + $0x59] sm:$0x1] %vm241, 0.0
          %vm250 = vcmask 7168
          %251 = vst.msk [vmem:[#allocation2] sm:$0xff] %vm250, 0.0
          %252 = vst.msk [vmem:[#allocation2 + $0x8] sm:$0xff] %vm250, 0.0
          %vm253 = vcmask 1024
          %254 = vst.msk [vmem:[#allocation2 + $0x10] sm:$0x3] %vm253, 0.0
          %255 = vst.msk [vmem:[#allocation2 + $0x18] sm:$0xff] %vm250, 0.0
          %256 = vst.msk [vmem:[#allocation2 + $0x20] sm:$0xff] %vm250, 0.0
          %257 = vst.msk [vmem:[#allocation2 + $0x28] sm:$0x3] %vm253, 0.0
          %258 = vst.msk [vmem:[#allocation2 + $0x30] sm:$0xff] %vm250, 0.0
          %259 = vst.msk [vmem:[#allocation2 + $0x38] sm:$0xff] %vm250, 0.0
          %260 = vst.msk [vmem:[#allocation2 + $0x40] sm:$0x3] %vm253, 0.0
          %261 = vst.msk [vmem:[#allocation2 + $0x48] sm:$0xff] %vm250, 0.0
          %262 = vst.msk [vmem:[#allocation2 + $0x50] sm:$0xff] %vm250, 0.0
          %263 = vst.msk [vmem:[#allocation2 + $0x58] sm:$0x3] %vm253, 0.0
          %vm264 = vcmask 146568
          %265 = vst.msk [vmem:[#allocation2] sm:$0xff] %vm264, 0.0
          %266 = vst.msk [vmem:[#allocation2 + $0x8] sm:$0xff] %vm264, 0.0
          %vm267 = vcmask 140424
          %268 = vst.msk [vmem:[#allocation2 + $0x10] sm:$0x3] %vm267, 0.0
          %269 = vst.msk [vmem:[#allocation2 + $0x18] sm:$0xff] %vm264, 0.0
          %270 = vst.msk [vmem:[#allocation2 + $0x20] sm:$0xff] %vm264, 0.0
          %271 = vst.msk [vmem:[#allocation2 + $0x28] sm:$0x3] %vm267, 0.0
          %272 = vst.msk [vmem:[#allocation2 + $0x30] sm:$0xff] %vm264, 0.0
          %273 = vst.msk [vmem:[#allocation2 + $0x38] sm:$0xff] %vm264, 0.0
          %274 = vst.msk [vmem:[#allocation2 + $0x40] sm:$0x3] %vm267, 0.0
          %275 = vst.msk [vmem:[#allocation2 + $0x48] sm:$0xff] %vm264, 0.0
          %276 = vst.msk [vmem:[#allocation2 + $0x50] sm:$0xff] %vm264, 0.0
          %277 = vst.msk [vmem:[#allocation2 + $0x58] sm:$0x3] %vm267, 0.0
          %v278 = vld [vmem:[%s194] sm:$0xff]
          %v279 = vld [vmem:[%s194 + $0x8] sm:$0xff]
          %v280 = vld [vmem:[%s194 + $0x10] sm:$0xff]
          %v281 = vld [vmem:[%s194 + $0x18] sm:$0xff]
          %v282 = vld [vmem:[%s194 + $0x20] sm:$0xff]
          %v283 = vld [vmem:[%s194 + $0x28] sm:$0xff]
          %v284 = vld [vmem:[%s194 + $0x30] sm:$0xff]
          %v285 = vld [vmem:[%s194 + $0x38] sm:$0xff]
          %294 = vrot.lane.b32.xlu0 %v278, 1
          %v295 = vpop.permute.xlu0 %294
          %296 = vrot.lane.b32.xlu0 %v279, 1
          %v297 = vpop.permute.xlu0 %296
          %298 = vrot.lane.b32.xlu0 %v280, 1
          %v299 = vpop.permute.xlu0 %298
          %300 = vrot.lane.b32.xlu0 %v281, 1
          %v301 = vpop.permute.xlu0 %300
          %302 = vrot.lane.b32.xlu0 %v282, 1
          %v303 = vpop.permute.xlu0 %302
          %304 = vrot.lane.b32.xlu0 %v283, 1
          %v305 = vpop.permute.xlu0 %304
          %306 = vrot.lane.b32.xlu0 %v284, 1
          %v307 = vpop.permute.xlu0 %306
          %308 = vrot.lane.b32.xlu0 %v285, 1
          %v309 = vpop.permute.xlu0 %308
          %vm318 = vcmask 138248
          %319 = vst.msk [vmem:[#allocation2 + $0x1] sm:$0xff] %vm318, %v295
          %320 = vst.msk [vmem:[#allocation2 + $0x9] sm:$0xff] %vm318, %v297
          %321 = vst.msk [vmem:[#allocation2 + $0x19] sm:$0xff] %vm318, %v299
          %322 = vst.msk [vmem:[#allocation2 + $0x21] sm:$0xff] %vm318, %v301
          %323 = vst.msk [vmem:[#allocation2 + $0x31] sm:$0xff] %vm318, %v303
          %324 = vst.msk [vmem:[#allocation2 + $0x39] sm:$0xff] %vm318, %v305
          %325 = vst.msk [vmem:[#allocation2 + $0x49] sm:$0xff] %vm318, %v307
          %326 = vst.msk [vmem:[#allocation2 + $0x51] sm:$0xff] %vm318, %v309
        $region40: #{tpu_custom_call.1} parent=27 // pred_fallthru
          _
        %s327 = smul.u32 %s27, 8
        %s328 = scalar_lea.vmem [#allocation2], %s327
        %v329 = vld [vmem:[%s328] sm:$0xff]
        %v330 = vld [vmem:[%s328 + $0x8] sm:$0x3]
        %v331 = vld [vmem:[%s328 + $0x18] sm:$0xff]
        %v332 = vld [vmem:[%s328 + $0x20] sm:$0x3]
        %v333 = vld [vmem:[%s328 + $0x30] sm:$0xff]
        %v334 = vld [vmem:[%s328 + $0x38] sm:$0x3]
        %v335 = vld [vmem:[%s328 + $0x48] sm:$0xff]
        %v336 = vld [vmem:[%s328 + $0x50] sm:$0x3]
        %v337 = vcombine.low %v329, %v333
        %v338 = vcombine.high %v329, %v333
        %v340 = vunpack.c.l.s4 1983009808
        %v341 = vunpack.c.0.s8 %v340
        %v342 = vlaneseq
        %v343 = vshrl.u32 %v342, 7
        %v344 = vsub.s32 %v341, %v343
        %v345 = vrot.slane %v337, %v344
        %v347 = vunpack.c.l.s4 1983009808
        %v348 = vunpack.c.0.s8 %v347
        %v349 = vlaneseq
        %v350 = vshrl.u32 %v349, 7
        %v351 = vsub.s32 %v348, %v350
        %v352 = vrot.slane %v338, %v351
        %v353 = vcombine.low %v331, %v335
        %v354 = vcombine.high %v331, %v335
        %v356 = vunpack.c.l.s4 1983009808
        %v357 = vunpack.c.0.s8 %v356
        %v358 = vlaneseq
        %v359 = vshrl.u32 %v358, 7
        %v360 = vsub.s32 %v357, %v359
        %v361 = vrot.slane %v353, %v360
        %v363 = vunpack.c.l.s4 1983009808
        %v364 = vunpack.c.0.s8 %v363
        %v365 = vlaneseq
        %v366 = vshrl.u32 %v365, 7
        %v367 = vsub.s32 %v364, %v366
        %v368 = vrot.slane %v354, %v367
        %v369 = vcombine.low %v345, %v361
        %v370 = vcombine.high %v345, %v361
        %v372 = vunpack.c.l.s4 1934713408
        %v373 = vunpack.c.0.s8 %v372
        %v374 = vlaneseq
        %v375 = vshrl.u32 %v374, 7
        %v376 = vsub.s32 %v373, %v375
        %v377 = vrot.slane %v369, %v376
        %v379 = vunpack.c.l.s4 1934713408
        %v380 = vunpack.c.0.s8 %v379
        %v381 = vlaneseq
        %v382 = vshrl.u32 %v381, 7
        %v383 = vsub.s32 %v380, %v382
        %v384 = vrot.slane %v370, %v383
        %v385 = vcombine.low %v352, %v368
        %v386 = vcombine.high %v352, %v368
        %v388 = vunpack.c.l.s4 1934713408
        %v389 = vunpack.c.0.s8 %v388
        %v390 = vlaneseq
        %v391 = vshrl.u32 %v390, 7
        %v392 = vsub.s32 %v389, %v391
        %v393 = vrot.slane %v385, %v392
        %v395 = vunpack.c.l.s4 1934713408
        %v396 = vunpack.c.0.s8 %v395
        %v397 = vlaneseq
        %v398 = vshrl.u32 %v397, 7
        %v399 = vsub.s32 %v396, %v398
        %v400 = vrot.slane %v386, %v399
        %v401 = vcombine.high %v377, 0.0
        %v402 = vcombine.high %v384, 0.0
        %v403 = vcombine.high %v393, 0.0
        %v404 = vcombine.high %v400, 0.0
        %406 = vrot.lane.b32.xlu0 %v401, 16
        %v407 = vpop.permute.xlu0 %406
        %410 = vrot.lane.b32.xlu0 %v384, 32
        %v411 = vpop.permute.xlu0 %410
        %414 = vrot.lane.b32.xlu0 %v402, 48
        %v415 = vpop.permute.xlu0 %414
        %418 = vrot.lane.b32.xlu0 %v393, 64
        %v419 = vpop.permute.xlu0 %418
        %422 = vrot.lane.b32.xlu0 %v403, 80
        %v423 = vpop.permute.xlu0 %422
        %426 = vrot.lane.b32.xlu0 %v400, 96
        %v427 = vpop.permute.xlu0 %426
        %430 = vrot.lane.b32.xlu0 %v404, 112
        %v431 = vpop.permute.xlu0 %430
        %vm433 = vcmask 130048
        %v434 = vsel %vm433, %v377, %v407
        %vm435 = vcmask 261120
        %v436 = vsel %vm435, %v434, %v411
        %vm437 = vcmask 392192
        %v438 = vsel %vm437, %v436, %v415
        %vm439 = vcmask 523264
        %v440 = vsel %vm439, %v438, %v419
        %vm441 = vcmask 654336
        %v442 = vsel %vm441, %v440, %v423
        %vm443 = vcmask 785408
        %v444 = vsel %vm443, %v442, %v427
        %vm445 = vcmask 916480
        %v446 = vsel %vm445, %v444, %v431
        %447 = vst [vmem:[#allocation3] sm:$0xf] %v446
        %452 = vrot.lane.b32.xlu0 %v329, 127
        %v453 = vpop.permute.xlu0 %452
        %454 = vrot.lane.b32.xlu0 %v331, 127
        %v455 = vpop.permute.xlu0 %454
        %456 = vrot.lane.b32.xlu0 %v333, 127
        %v457 = vpop.permute.xlu0 %456
        %458 = vrot.lane.b32.xlu0 %v335, 127
        %v459 = vpop.permute.xlu0 %458
        %v464 = vcombine.low %v453, %v457
        %v465 = vcombine.high %v453, %v457
        %v467 = vunpack.c.l.s4 1983009808
        %v468 = vunpack.c.0.s8 %v467
        %v469 = vlaneseq
        %v470 = vshrl.u32 %v469, 7
        %v471 = vsub.s32 %v468, %v470
        %v472 = vrot.slane %v464, %v471
        %v474 = vunpack.c.l.s4 1983009808
        %v475 = vunpack.c.0.s8 %v474
        %v476 = vlaneseq
        %v477 = vshrl.u32 %v476, 7
        %v478 = vsub.s32 %v475, %v477
        %v479 = vrot.slane %v465, %v478
        %v480 = vcombine.low %v455, %v459
        %v481 = vcombine.high %v455, %v459
        %v483 = vunpack.c.l.s4 1983009808
        %v484 = vunpack.c.0.s8 %v483
        %v485 = vlaneseq
        %v486 = vshrl.u32 %v485, 7
        %v487 = vsub.s32 %v484, %v486
        %v488 = vrot.slane %v480, %v487
        %v490 = vunpack.c.l.s4 1983009808
        %v491 = vunpack.c.0.s8 %v490
        %v492 = vlaneseq
        %v493 = vshrl.u32 %v492, 7
        %v494 = vsub.s32 %v491, %v493
        %v495 = vrot.slane %v481, %v494
        %v496 = vcombine.low %v472, %v488
        %v497 = vcombine.high %v472, %v488
        %v499 = vunpack.c.l.s4 1934713408
        %v500 = vunpack.c.0.s8 %v499
        %v501 = vlaneseq
        %v502 = vshrl.u32 %v501, 7
        %v503 = vsub.s32 %v500, %v502
        %v504 = vrot.slane %v496, %v503
        %v506 = vunpack.c.l.s4 1934713408
        %v507 = vunpack.c.0.s8 %v506
        %v508 = vlaneseq
        %v509 = vshrl.u32 %v508, 7
        %v510 = vsub.s32 %v507, %v509
        %v511 = vrot.slane %v497, %v510
        %v512 = vcombine.low %v479, %v495
        %v513 = vcombine.high %v479, %v495
        %v515 = vunpack.c.l.s4 1934713408
        %v516 = vunpack.c.0.s8 %v515
        %v517 = vlaneseq
        %v518 = vshrl.u32 %v517, 7
        %v519 = vsub.s32 %v516, %v518
        %v520 = vrot.slane %v512, %v519
        %v522 = vunpack.c.l.s4 1934713408
        %v523 = vunpack.c.0.s8 %v522
        %v524 = vlaneseq
        %v525 = vshrl.u32 %v524, 7
        %v526 = vsub.s32 %v523, %v525
        %v527 = vrot.slane %v513, %v526
        %v528 = vcombine.high %v504, 0.0
        %v529 = vcombine.high %v511, 0.0
        %v530 = vcombine.high %v520, 0.0
        %v531 = vcombine.high %v527, 0.0
        %533 = vrot.lane.b32.xlu0 %v528, 16
        %v534 = vpop.permute.xlu0 %533
        %537 = vrot.lane.b32.xlu0 %v511, 32
        %v538 = vpop.permute.xlu0 %537
        %541 = vrot.lane.b32.xlu0 %v529, 48
        %v542 = vpop.permute.xlu0 %541
        %545 = vrot.lane.b32.xlu0 %v520, 64
        %v546 = vpop.permute.xlu0 %545
        %549 = vrot.lane.b32.xlu0 %v530, 80
        %v550 = vpop.permute.xlu0 %549
        %553 = vrot.lane.b32.xlu0 %v527, 96
        %v554 = vpop.permute.xlu0 %553
        %557 = vrot.lane.b32.xlu0 %v531, 112
        %v558 = vpop.permute.xlu0 %557
        %v560 = vsel %vm433, %v504, %v534
        %v561 = vsel %vm435, %v560, %v538
        %v562 = vsel %vm437, %v561, %v542
        %v563 = vsel %vm439, %v562, %v546
        %v564 = vsel %vm441, %v563, %v550
        %v565 = vsel %vm443, %v564, %v554
        %v566 = vsel %vm445, %v565, %v558
        %567 = vst [vmem:[#allocation3 + $0x4] sm:$0xf] %v566
        %568 = vrot.lane.b32.xlu0 %v329, 126
        %v569 = vpop.permute.xlu0 %568
        %570 = vrot.lane.b32.xlu0 %v331, 126
        %v571 = vpop.permute.xlu0 %570
        %572 = vrot.lane.b32.xlu0 %v333, 126
        %v573 = vpop.permute.xlu0 %572
        %574 = vrot.lane.b32.xlu0 %v335, 126
        %v575 = vpop.permute.xlu0 %574
        %v580 = vcombine.low %v569, %v573
        %v581 = vcombine.high %v569, %v573
        %v583 = vunpack.c.l.s4 1983009808
        %v584 = vunpack.c.0.s8 %v583
        %v585 = vlaneseq
        %v586 = vshrl.u32 %v585, 7
        %v587 = vsub.s32 %v584, %v586
        %v588 = vrot.slane %v580, %v587
        %v590 = vunpack.c.l.s4 1983009808
        %v591 = vunpack.c.0.s8 %v590
        %v592 = vlaneseq
        %v593 = vshrl.u32 %v592, 7
        %v594 = vsub.s32 %v591, %v593
        %v595 = vrot.slane %v581, %v594
        %v596 = vcombine.low %v571, %v575
        %v597 = vcombine.high %v571, %v575
        %v599 = vunpack.c.l.s4 1983009808
        %v600 = vunpack.c.0.s8 %v599
        %v601 = vlaneseq
        %v602 = vshrl.u32 %v601, 7
        %v603 = vsub.s32 %v600, %v602
        %v604 = vrot.slane %v596, %v603
        %v606 = vunpack.c.l.s4 1983009808
        %v607 = vunpack.c.0.s8 %v606
        %v608 = vlaneseq
        %v609 = vshrl.u32 %v608, 7
        %v610 = vsub.s32 %v607, %v609
        %v611 = vrot.slane %v597, %v610
        %v612 = vcombine.low %v588, %v604
        %v613 = vcombine.high %v588, %v604
        %v615 = vunpack.c.l.s4 1934713408
        %v616 = vunpack.c.0.s8 %v615
        %v617 = vlaneseq
        %v618 = vshrl.u32 %v617, 7
        %v619 = vsub.s32 %v616, %v618
        %v620 = vrot.slane %v612, %v619
        %v622 = vunpack.c.l.s4 1934713408
        %v623 = vunpack.c.0.s8 %v622
        %v624 = vlaneseq
        %v625 = vshrl.u32 %v624, 7
        %v626 = vsub.s32 %v623, %v625
        %v627 = vrot.slane %v613, %v626
        %v628 = vcombine.low %v595, %v611
        %v629 = vcombine.high %v595, %v611
        %v631 = vunpack.c.l.s4 1934713408
        %v632 = vunpack.c.0.s8 %v631
        %v633 = vlaneseq
        %v634 = vshrl.u32 %v633, 7
        %v635 = vsub.s32 %v632, %v634
        %v636 = vrot.slane %v628, %v635
        %v638 = vunpack.c.l.s4 1934713408
        %v639 = vunpack.c.0.s8 %v638
        %v640 = vlaneseq
        %v641 = vshrl.u32 %v640, 7
        %v642 = vsub.s32 %v639, %v641
        %v643 = vrot.slane %v629, %v642
        %v644 = vcombine.high %v620, 0.0
        %v645 = vcombine.high %v627, 0.0
        %v646 = vcombine.high %v636, 0.0
        %v647 = vcombine.high %v643, 0.0
        %649 = vrot.lane.b32.xlu0 %v644, 16
        %v650 = vpop.permute.xlu0 %649
        %653 = vrot.lane.b32.xlu0 %v627, 32
        %v654 = vpop.permute.xlu0 %653
        %657 = vrot.lane.b32.xlu0 %v645, 48
        %v658 = vpop.permute.xlu0 %657
        %661 = vrot.lane.b32.xlu0 %v636, 64
        %v662 = vpop.permute.xlu0 %661
        %665 = vrot.lane.b32.xlu0 %v646, 80
        %v666 = vpop.permute.xlu0 %665
        %669 = vrot.lane.b32.xlu0 %v643, 96
        %v670 = vpop.permute.xlu0 %669
        %673 = vrot.lane.b32.xlu0 %v647, 112
        %v674 = vpop.permute.xlu0 %673
        %v676 = vsel %vm433, %v620, %v650
        %v677 = vsel %vm435, %v676, %v654
        %v678 = vsel %vm437, %v677, %v658
        %v679 = vsel %vm439, %v678, %v662
        %v680 = vsel %vm441, %v679, %v666
        %v681 = vsel %vm443, %v680, %v670
        %v682 = vsel %vm445, %v681, %v674
        %683 = vst [vmem:[#allocation3 + $0x8] sm:$0xf] %v682
        %vm688 = vcmask 1046528
        %v689 = vrot.slane %v329, 1
        %v690 = vrot.slane %v330, 1
        %v691 = vsel %vm688, %v689, %v690
        %v692 = vrot.slane %v331, 1
        %v693 = vrot.slane %v332, 1
        %v694 = vsel %vm688, %v692, %v693
        %v695 = vrot.slane %v333, 1
        %v696 = vrot.slane %v334, 1
        %v697 = vsel %vm688, %v695, %v696
        %v698 = vrot.slane %v335, 1
        %v699 = vrot.slane %v336, 1
        %v700 = vsel %vm688, %v698, %v699
        %v705 = vcombine.low %v691, %v697
        %v706 = vcombine.high %v691, %v697
        %v708 = vunpack.c.l.s4 1983009808
        %v709 = vunpack.c.0.s8 %v708
        %v710 = vlaneseq
        %v711 = vshrl.u32 %v710, 7
        %v712 = vsub.s32 %v709, %v711
        %v713 = vrot.slane %v705, %v712
        %v715 = vunpack.c.l.s4 1983009808
        %v716 = vunpack.c.0.s8 %v715
        %v717 = vlaneseq
        %v718 = vshrl.u32 %v717, 7
        %v719 = vsub.s32 %v716, %v718
        %v720 = vrot.slane %v706, %v719
        %v721 = vcombine.low %v694, %v700
        %v722 = vcombine.high %v694, %v700
        %v724 = vunpack.c.l.s4 1983009808
        %v725 = vunpack.c.0.s8 %v724
        %v726 = vlaneseq
        %v727 = vshrl.u32 %v726, 7
        %v728 = vsub.s32 %v725, %v727
        %v729 = vrot.slane %v721, %v728
        %v731 = vunpack.c.l.s4 1983009808
        %v732 = vunpack.c.0.s8 %v731
        %v733 = vlaneseq
        %v734 = vshrl.u32 %v733, 7
        %v735 = vsub.s32 %v732, %v734
        %v736 = vrot.slane %v722, %v735
        %v737 = vcombine.low %v713, %v729
        %v738 = vcombine.high %v713, %v729
        %v740 = vunpack.c.l.s4 1934713408
        %v741 = vunpack.c.0.s8 %v740
        %v742 = vlaneseq
        %v743 = vshrl.u32 %v742, 7
        %v744 = vsub.s32 %v741, %v743
        %v745 = vrot.slane %v737, %v744
        %v747 = vunpack.c.l.s4 1934713408
        %v748 = vunpack.c.0.s8 %v747
        %v749 = vlaneseq
        %v750 = vshrl.u32 %v749, 7
        %v751 = vsub.s32 %v748, %v750
        %v752 = vrot.slane %v738, %v751
        %v753 = vcombine.low %v720, %v736
        %v754 = vcombine.high %v720, %v736
        %v756 = vunpack.c.l.s4 1934713408
        %v757 = vunpack.c.0.s8 %v756
        %v758 = vlaneseq
        %v759 = vshrl.u32 %v758, 7
        %v760 = vsub.s32 %v757, %v759
        %v761 = vrot.slane %v753, %v760
        %v763 = vunpack.c.l.s4 1934713408
        %v764 = vunpack.c.0.s8 %v763
        %v765 = vlaneseq
        %v766 = vshrl.u32 %v765, 7
        %v767 = vsub.s32 %v764, %v766
        %v768 = vrot.slane %v754, %v767
        %v769 = vcombine.high %v745, 0.0
        %v770 = vcombine.high %v752, 0.0
        %v771 = vcombine.high %v761, 0.0
        %v772 = vcombine.high %v768, 0.0
        %774 = vrot.lane.b32.xlu0 %v769, 16
        %v775 = vpop.permute.xlu0 %774
        %778 = vrot.lane.b32.xlu0 %v752, 32
        %v779 = vpop.permute.xlu0 %778
        %782 = vrot.lane.b32.xlu0 %v770, 48
        %v783 = vpop.permute.xlu0 %782
        %786 = vrot.lane.b32.xlu0 %v761, 64
        %v787 = vpop.permute.xlu0 %786
        %790 = vrot.lane.b32.xlu0 %v771, 80
        %v791 = vpop.permute.xlu0 %790
        %794 = vrot.lane.b32.xlu0 %v768, 96
        %v795 = vpop.permute.xlu0 %794
        %798 = vrot.lane.b32.xlu0 %v772, 112
        %v799 = vpop.permute.xlu0 %798
        %v801 = vsel %vm433, %v745, %v775
        %v802 = vsel %vm435, %v801, %v779
        %v803 = vsel %vm437, %v802, %v783
        %v804 = vsel %vm439, %v803, %v787
        %v805 = vsel %vm441, %v804, %v791
        %v806 = vsel %vm443, %v805, %v795
        %v807 = vsel %vm445, %v806, %v799
        %808 = vst [vmem:[#allocation3 + $0xc] sm:$0xf] %v807
        %809 = vrot.lane.b32.xlu0 %v691, 127
        %v810 = vpop.permute.xlu0 %809
        %811 = vrot.lane.b32.xlu0 %v694, 127
        %v812 = vpop.permute.xlu0 %811
        %813 = vrot.lane.b32.xlu0 %v697, 127
        %v814 = vpop.permute.xlu0 %813
        %815 = vrot.lane.b32.xlu0 %v700, 127
        %v816 = vpop.permute.xlu0 %815
        %v821 = vcombine.low %v810, %v814
        %v822 = vcombine.high %v810, %v814
        %v824 = vunpack.c.l.s4 1983009808
        %v825 = vunpack.c.0.s8 %v824
        %v826 = vlaneseq
        %v827 = vshrl.u32 %v826, 7
        %v828 = vsub.s32 %v825, %v827
        %v829 = vrot.slane %v821, %v828
        %v831 = vunpack.c.l.s4 1983009808
        %v832 = vunpack.c.0.s8 %v831
        %v833 = vlaneseq
        %v834 = vshrl.u32 %v833, 7
        %v835 = vsub.s32 %v832, %v834
        %v836 = vrot.slane %v822, %v835
        %v837 = vcombine.low %v812, %v816
        %v838 = vcombine.high %v812, %v816
        %v840 = vunpack.c.l.s4 1983009808
        %v841 = vunpack.c.0.s8 %v840
        %v842 = vlaneseq
        %v843 = vshrl.u32 %v842, 7
        %v844 = vsub.s32 %v841, %v843
        %v845 = vrot.slane %v837, %v844
        %v847 = vunpack.c.l.s4 1983009808
        %v848 = vunpack.c.0.s8 %v847
        %v849 = vlaneseq
        %v850 = vshrl.u32 %v849, 7
        %v851 = vsub.s32 %v848, %v850
        %v852 = vrot.slane %v838, %v851
        %v853 = vcombine.low %v829, %v845
        %v854 = vcombine.high %v829, %v845
        %v856 = vunpack.c.l.s4 1934713408
        %v857 = vunpack.c.0.s8 %v856
        %v858 = vlaneseq
        %v859 = vshrl.u32 %v858, 7
        %v860 = vsub.s32 %v857, %v859
        %v861 = vrot.slane %v853, %v860
        %v863 = vunpack.c.l.s4 1934713408
        %v864 = vunpack.c.0.s8 %v863
        %v865 = vlaneseq
        %v866 = vshrl.u32 %v865, 7
        %v867 = vsub.s32 %v864, %v866
        %v868 = vrot.slane %v854, %v867
        %v869 = vcombine.low %v836, %v852
        %v870 = vcombine.high %v836, %v852
        %v872 = vunpack.c.l.s4 1934713408
        %v873 = vunpack.c.0.s8 %v872
        %v874 = vlaneseq
        %v875 = vshrl.u32 %v874, 7
        %v876 = vsub.s32 %v873, %v875
        %v877 = vrot.slane %v869, %v876
        %v879 = vunpack.c.l.s4 1934713408
        %v880 = vunpack.c.0.s8 %v879
        %v881 = vlaneseq
        %v882 = vshrl.u32 %v881, 7
        %v883 = vsub.s32 %v880, %v882
        %v884 = vrot.slane %v870, %v883
        %v885 = vcombine.high %v861, 0.0
        %v886 = vcombine.high %v868, 0.0
        %v887 = vcombine.high %v877, 0.0
        %v888 = vcombine.high %v884, 0.0
        %890 = vrot.lane.b32.xlu0 %v885, 16
        %v891 = vpop.permute.xlu0 %890
        %894 = vrot.lane.b32.xlu0 %v868, 32
        %v895 = vpop.permute.xlu0 %894
        %898 = vrot.lane.b32.xlu0 %v886, 48
        %v899 = vpop.permute.xlu0 %898
        %902 = vrot.lane.b32.xlu0 %v877, 64
        %v903 = vpop.permute.xlu0 %902
        %906 = vrot.lane.b32.xlu0 %v887, 80
        %v907 = vpop.permute.xlu0 %906
        %910 = vrot.lane.b32.xlu0 %v884, 96
        %v911 = vpop.permute.xlu0 %910
        %914 = vrot.lane.b32.xlu0 %v888, 112
        %v915 = vpop.permute.xlu0 %914
        %v917 = vsel %vm433, %v861, %v891
        %v918 = vsel %vm435, %v917, %v895
        %v919 = vsel %vm437, %v918, %v899
        %v920 = vsel %vm439, %v919, %v903
        %v921 = vsel %vm441, %v920, %v907
        %v922 = vsel %vm443, %v921, %v911
        %v923 = vsel %vm445, %v922, %v915
        %924 = vst [vmem:[#allocation3 + $0x10] sm:$0xf] %v923
        %925 = vrot.lane.b32.xlu0 %v691, 126
        %v926 = vpop.permute.xlu0 %925
        %927 = vrot.lane.b32.xlu0 %v694, 126
        %v928 = vpop.permute.xlu0 %927
        %929 = vrot.lane.b32.xlu0 %v697, 126
        %v930 = vpop.permute.xlu0 %929
        %931 = vrot.lane.b32.xlu0 %v700, 126
        %v932 = vpop.permute.xlu0 %931
        %v937 = vcombine.low %v926, %v930
        %v938 = vcombine.high %v926, %v930
        %v940 = vunpack.c.l.s4 1983009808
        %v941 = vunpack.c.0.s8 %v940
        %v942 = vlaneseq
        %v943 = vshrl.u32 %v942, 7
        %v944 = vsub.s32 %v941, %v943
        %v945 = vrot.slane %v937, %v944
        %v947 = vunpack.c.l.s4 1983009808
        %v948 = vunpack.c.0.s8 %v947
        %v949 = vlaneseq
        %v950 = vshrl.u32 %v949, 7
        %v951 = vsub.s32 %v948, %v950
        %v952 = vrot.slane %v938, %v951
        %v953 = vcombine.low %v928, %v932
        %v954 = vcombine.high %v928, %v932
        %v956 = vunpack.c.l.s4 1983009808
        %v957 = vunpack.c.0.s8 %v956
        %v958 = vlaneseq
        %v959 = vshrl.u32 %v958, 7
        %v960 = vsub.s32 %v957, %v959
        %v961 = vrot.slane %v953, %v960
        %v963 = vunpack.c.l.s4 1983009808
        %v964 = vunpack.c.0.s8 %v963
        %v965 = vlaneseq
        %v966 = vshrl.u32 %v965, 7
        %v967 = vsub.s32 %v964, %v966
        %v968 = vrot.slane %v954, %v967
        %v969 = vcombine.low %v945, %v961
        %v970 = vcombine.high %v945, %v961
        %v972 = vunpack.c.l.s4 1934713408
        %v973 = vunpack.c.0.s8 %v972
        %v974 = vlaneseq
        %v975 = vshrl.u32 %v974, 7
        %v976 = vsub.s32 %v973, %v975
        %v977 = vrot.slane %v969, %v976
        %v979 = vunpack.c.l.s4 1934713408
        %v980 = vunpack.c.0.s8 %v979
        %v981 = vlaneseq
        %v982 = vshrl.u32 %v981, 7
        %v983 = vsub.s32 %v980, %v982
        %v984 = vrot.slane %v970, %v983
        %v985 = vcombine.low %v952, %v968
        %v986 = vcombine.high %v952, %v968
        %v988 = vunpack.c.l.s4 1934713408
        %v989 = vunpack.c.0.s8 %v988
        %v990 = vlaneseq
        %v991 = vshrl.u32 %v990, 7
        %v992 = vsub.s32 %v989, %v991
        %v993 = vrot.slane %v985, %v992
        %v995 = vunpack.c.l.s4 1934713408
        %v996 = vunpack.c.0.s8 %v995
        %v997 = vlaneseq
        %v998 = vshrl.u32 %v997, 7
        %v999 = vsub.s32 %v996, %v998
        %v1000 = vrot.slane %v986, %v999
        %v1001 = vcombine.high %v977, 0.0
        %v1002 = vcombine.high %v984, 0.0
        %v1003 = vcombine.high %v993, 0.0
        %v1004 = vcombine.high %v1000, 0.0
        %1006 = vrot.lane.b32.xlu0 %v1001, 16
        %v1007 = vpop.permute.xlu0 %1006
        %1010 = vrot.lane.b32.xlu0 %v984, 32
        %v1011 = vpop.permute.xlu0 %1010
        %1014 = vrot.lane.b32.xlu0 %v1002, 48
        %v1015 = vpop.permute.xlu0 %1014
        %1018 = vrot.lane.b32.xlu0 %v993, 64
        %v1019 = vpop.permute.xlu0 %1018
        %1022 = vrot.lane.b32.xlu0 %v1003, 80
        %v1023 = vpop.permute.xlu0 %1022
        %1026 = vrot.lane.b32.xlu0 %v1000, 96
        %v1027 = vpop.permute.xlu0 %1026
        %1030 = vrot.lane.b32.xlu0 %v1004, 112
        %v1031 = vpop.permute.xlu0 %1030
        %v1033 = vsel %vm433, %v977, %v1007
        %v1034 = vsel %vm435, %v1033, %v1011
        %v1035 = vsel %vm437, %v1034, %v1015
        %v1036 = vsel %vm439, %v1035, %v1019
        %v1037 = vsel %vm441, %v1036, %v1023
        %v1038 = vsel %vm443, %v1037, %v1027
        %v1039 = vsel %vm445, %v1038, %v1031
        %1040 = vst [vmem:[#allocation3 + $0x14] sm:$0xf] %v1039
        %vm1041 = vcmask 1045504
        %v1042 = vrot.slane %v329, 2
        %v1043 = vrot.slane %v330, 2
        %v1044 = vsel %vm1041, %v1042, %v1043
        %v1045 = vrot.slane %v331, 2
        %v1046 = vrot.slane %v332, 2
        %v1047 = vsel %vm1041, %v1045, %v1046
        %v1048 = vrot.slane %v333, 2
        %v1049 = vrot.slane %v334, 2
        %v1050 = vsel %vm1041, %v1048, %v1049
        %v1051 = vrot.slane %v335, 2
        %v1052 = vrot.slane %v336, 2
        %v1053 = vsel %vm1041, %v1051, %v1052
        %v1058 = vcombine.low %v1044, %v1050
        %v1059 = vcombine.high %v1044, %v1050
        %v1061 = vunpack.c.l.s4 1983009808
        %v1062 = vunpack.c.0.s8 %v1061
        %v1063 = vlaneseq
        %v1064 = vshrl.u32 %v1063, 7
        %v1065 = vsub.s32 %v1062, %v1064
        %v1066 = vrot.slane %v1058, %v1065
        %v1068 = vunpack.c.l.s4 1983009808
        %v1069 = vunpack.c.0.s8 %v1068
        %v1070 = vlaneseq
        %v1071 = vshrl.u32 %v1070, 7
        %v1072 = vsub.s32 %v1069, %v1071
        %v1073 = vrot.slane %v1059, %v1072
        %v1074 = vcombine.low %v1047, %v1053
        %v1075 = vcombine.high %v1047, %v1053
        %v1077 = vunpack.c.l.s4 1983009808
        %v1078 = vunpack.c.0.s8 %v1077
        %v1079 = vlaneseq
        %v1080 = vshrl.u32 %v1079, 7
        %v1081 = vsub.s32 %v1078, %v1080
        %v1082 = vrot.slane %v1074, %v1081
        %v1084 = vunpack.c.l.s4 1983009808
        %v1085 = vunpack.c.0.s8 %v1084
        %v1086 = vlaneseq
        %v1087 = vshrl.u32 %v1086, 7
        %v1088 = vsub.s32 %v1085, %v1087
        %v1089 = vrot.slane %v1075, %v1088
        %v1090 = vcombine.low %v1066, %v1082
        %v1091 = vcombine.high %v1066, %v1082
        %v1093 = vunpack.c.l.s4 1934713408
        %v1094 = vunpack.c.0.s8 %v1093
        %v1095 = vlaneseq
        %v1096 = vshrl.u32 %v1095, 7
        %v1097 = vsub.s32 %v1094, %v1096
        %v1098 = vrot.slane %v1090, %v1097
        %v1100 = vunpack.c.l.s4 1934713408
        %v1101 = vunpack.c.0.s8 %v1100
        %v1102 = vlaneseq
        %v1103 = vshrl.u32 %v1102, 7
        %v1104 = vsub.s32 %v1101, %v1103
        %v1105 = vrot.slane %v1091, %v1104
        %v1106 = vcombine.low %v1073, %v1089
        %v1107 = vcombine.high %v1073, %v1089
        %v1109 = vunpack.c.l.s4 1934713408
        %v1110 = vunpack.c.0.s8 %v1109
        %v1111 = vlaneseq
        %v1112 = vshrl.u32 %v1111, 7
        %v1113 = vsub.s32 %v1110, %v1112
        %v1114 = vrot.slane %v1106, %v1113
        %v1116 = vunpack.c.l.s4 1934713408
        %v1117 = vunpack.c.0.s8 %v1116
        %v1118 = vlaneseq
        %v1119 = vshrl.u32 %v1118, 7
        %v1120 = vsub.s32 %v1117, %v1119
        %v1121 = vrot.slane %v1107, %v1120
        %v1122 = vcombine.high %v1098, 0.0
        %v1123 = vcombine.high %v1105, 0.0
        %v1124 = vcombine.high %v1114, 0.0
        %v1125 = vcombine.high %v1121, 0.0
        %1127 = vrot.lane.b32.xlu0 %v1122, 16
        %v1128 = vpop.permute.xlu0 %1127
        %1131 = vrot.lane.b32.xlu0 %v1105, 32
        %v1132 = vpop.permute.xlu0 %1131
        %1135 = vrot.lane.b32.xlu0 %v1123, 48
        %v1136 = vpop.permute.xlu0 %1135
        %1139 = vrot.lane.b32.xlu0 %v1114, 64
        %v1140 = vpop.permute.xlu0 %1139
        %1143 = vrot.lane.b32.xlu0 %v1124, 80
        %v1144 = vpop.permute.xlu0 %1143
        %1147 = vrot.lane.b32.xlu0 %v1121, 96
        %v1148 = vpop.permute.xlu0 %1147
        %1151 = vrot.lane.b32.xlu0 %v1125, 112
        %v1152 = vpop.permute.xlu0 %1151
        %v1154 = vsel %vm433, %v1098, %v1128
        %v1155 = vsel %vm435, %v1154, %v1132
        %v1156 = vsel %vm437, %v1155, %v1136
        %v1157 = vsel %vm439, %v1156, %v1140
        %v1158 = vsel %vm441, %v1157, %v1144
        %v1159 = vsel %vm443, %v1158, %v1148
        %v1160 = vsel %vm445, %v1159, %v1152
        %1161 = vst [vmem:[#allocation3 + $0x18] sm:$0xf] %v1160
        %1162 = vrot.lane.b32.xlu0 %v1044, 127
        %v1163 = vpop.permute.xlu0 %1162
        %1164 = vrot.lane.b32.xlu0 %v1047, 127
        %v1165 = vpop.permute.xlu0 %1164
        %1166 = vrot.lane.b32.xlu0 %v1050, 127
        %v1167 = vpop.permute.xlu0 %1166
        %1168 = vrot.lane.b32.xlu0 %v1053, 127
        %v1169 = vpop.permute.xlu0 %1168
        %v1174 = vcombine.low %v1163, %v1167
        %v1175 = vcombine.high %v1163, %v1167
        %v1177 = vunpack.c.l.s4 1983009808
        %v1178 = vunpack.c.0.s8 %v1177
        %v1179 = vlaneseq
        %v1180 = vshrl.u32 %v1179, 7
        %v1181 = vsub.s32 %v1178, %v1180
        %v1182 = vrot.slane %v1174, %v1181
        %v1184 = vunpack.c.l.s4 1983009808
        %v1185 = vunpack.c.0.s8 %v1184
        %v1186 = vlaneseq
        %v1187 = vshrl.u32 %v1186, 7
        %v1188 = vsub.s32 %v1185, %v1187
        %v1189 = vrot.slane %v1175, %v1188
        %v1190 = vcombine.low %v1165, %v1169
        %v1191 = vcombine.high %v1165, %v1169
        %v1193 = vunpack.c.l.s4 1983009808
        %v1194 = vunpack.c.0.s8 %v1193
        %v1195 = vlaneseq
        %v1196 = vshrl.u32 %v1195, 7
        %v1197 = vsub.s32 %v1194, %v1196
        %v1198 = vrot.slane %v1190, %v1197
        %v1200 = vunpack.c.l.s4 1983009808
        %v1201 = vunpack.c.0.s8 %v1200
        %v1202 = vlaneseq
        %v1203 = vshrl.u32 %v1202, 7
        %v1204 = vsub.s32 %v1201, %v1203
        %v1205 = vrot.slane %v1191, %v1204
        %v1206 = vcombine.low %v1182, %v1198
        %v1207 = vcombine.high %v1182, %v1198
        %v1209 = vunpack.c.l.s4 1934713408
        %v1210 = vunpack.c.0.s8 %v1209
        %v1211 = vlaneseq
        %v1212 = vshrl.u32 %v1211, 7
        %v1213 = vsub.s32 %v1210, %v1212
        %v1214 = vrot.slane %v1206, %v1213
        %v1216 = vunpack.c.l.s4 1934713408
        %v1217 = vunpack.c.0.s8 %v1216
        %v1218 = vlaneseq
        %v1219 = vshrl.u32 %v1218, 7
        %v1220 = vsub.s32 %v1217, %v1219
        %v1221 = vrot.slane %v1207, %v1220
        %v1222 = vcombine.low %v1189, %v1205
        %v1223 = vcombine.high %v1189, %v1205
        %v1225 = vunpack.c.l.s4 1934713408
        %v1226 = vunpack.c.0.s8 %v1225
        %v1227 = vlaneseq
        %v1228 = vshrl.u32 %v1227, 7
        %v1229 = vsub.s32 %v1226, %v1228
        %v1230 = vrot.slane %v1222, %v1229
        %v1232 = vunpack.c.l.s4 1934713408
        %v1233 = vunpack.c.0.s8 %v1232
        %v1234 = vlaneseq
        %v1235 = vshrl.u32 %v1234, 7
        %v1236 = vsub.s32 %v1233, %v1235
        %v1237 = vrot.slane %v1223, %v1236
        %v1238 = vcombine.high %v1214, 0.0
        %v1239 = vcombine.high %v1221, 0.0
        %v1240 = vcombine.high %v1230, 0.0
        %v1241 = vcombine.high %v1237, 0.0
        %1243 = vrot.lane.b32.xlu0 %v1238, 16
        %v1244 = vpop.permute.xlu0 %1243
        %1247 = vrot.lane.b32.xlu0 %v1221, 32
        %v1248 = vpop.permute.xlu0 %1247
        %1251 = vrot.lane.b32.xlu0 %v1239, 48
        %v1252 = vpop.permute.xlu0 %1251
        %1255 = vrot.lane.b32.xlu0 %v1230, 64
        %v1256 = vpop.permute.xlu0 %1255
        %1259 = vrot.lane.b32.xlu0 %v1240, 80
        %v1260 = vpop.permute.xlu0 %1259
        %1263 = vrot.lane.b32.xlu0 %v1237, 96
        %v1264 = vpop.permute.xlu0 %1263
        %1267 = vrot.lane.b32.xlu0 %v1241, 112
        %v1268 = vpop.permute.xlu0 %1267
        %v1270 = vsel %vm433, %v1214, %v1244
        %v1271 = vsel %vm435, %v1270, %v1248
        %v1272 = vsel %vm437, %v1271, %v1252
        %v1273 = vsel %vm439, %v1272, %v1256
        %v1274 = vsel %vm441, %v1273, %v1260
        %v1275 = vsel %vm443, %v1274, %v1264
        %v1276 = vsel %vm445, %v1275, %v1268
        %1277 = vst [vmem:[#allocation3 + $0x1c] sm:$0xf] %v1276
        %1278 = vrot.lane.b32.xlu0 %v1044, 126
        %v1279 = vpop.permute.xlu0 %1278
        %1280 = vrot.lane.b32.xlu0 %v1047, 126
        %v1281 = vpop.permute.xlu0 %1280
        %1282 = vrot.lane.b32.xlu0 %v1050, 126
        %v1283 = vpop.permute.xlu0 %1282
        %1284 = vrot.lane.b32.xlu0 %v1053, 126
        %v1285 = vpop.permute.xlu0 %1284
        %v1290 = vcombine.low %v1279, %v1283
        %v1291 = vcombine.high %v1279, %v1283
        %v1293 = vunpack.c.l.s4 1983009808
        %v1294 = vunpack.c.0.s8 %v1293
        %v1295 = vlaneseq
        %v1296 = vshrl.u32 %v1295, 7
        %v1297 = vsub.s32 %v1294, %v1296
        %v1298 = vrot.slane %v1290, %v1297
        %v1300 = vunpack.c.l.s4 1983009808
        %v1301 = vunpack.c.0.s8 %v1300
        %v1302 = vlaneseq
        %v1303 = vshrl.u32 %v1302, 7
        %v1304 = vsub.s32 %v1301, %v1303
        %v1305 = vrot.slane %v1291, %v1304
        %v1306 = vcombine.low %v1281, %v1285
        %v1307 = vcombine.high %v1281, %v1285
        %v1309 = vunpack.c.l.s4 1983009808
        %v1310 = vunpack.c.0.s8 %v1309
        %v1311 = vlaneseq
        %v1312 = vshrl.u32 %v1311, 7
        %v1313 = vsub.s32 %v1310, %v1312
        %v1314 = vrot.slane %v1306, %v1313
        %v1316 = vunpack.c.l.s4 1983009808
        %v1317 = vunpack.c.0.s8 %v1316
        %v1318 = vlaneseq
        %v1319 = vshrl.u32 %v1318, 7
        %v1320 = vsub.s32 %v1317, %v1319
        %v1321 = vrot.slane %v1307, %v1320
        %v1322 = vcombine.low %v1298, %v1314
        %v1323 = vcombine.high %v1298, %v1314
        %v1325 = vunpack.c.l.s4 1934713408
        %v1326 = vunpack.c.0.s8 %v1325
        %v1327 = vlaneseq
        %v1328 = vshrl.u32 %v1327, 7
        %v1329 = vsub.s32 %v1326, %v1328
        %v1330 = vrot.slane %v1322, %v1329
        %v1332 = vunpack.c.l.s4 1934713408
        %v1333 = vunpack.c.0.s8 %v1332
        %v1334 = vlaneseq
        %v1335 = vshrl.u32 %v1334, 7
        %v1336 = vsub.s32 %v1333, %v1335
        %v1337 = vrot.slane %v1323, %v1336
        %v1338 = vcombine.low %v1305, %v1321
        %v1339 = vcombine.high %v1305, %v1321
        %v1341 = vunpack.c.l.s4 1934713408
        %v1342 = vunpack.c.0.s8 %v1341
        %v1343 = vlaneseq
        %v1344 = vshrl.u32 %v1343, 7
        %v1345 = vsub.s32 %v1342, %v1344
        %v1346 = vrot.slane %v1338, %v1345
        %v1348 = vunpack.c.l.s4 1934713408
        %v1349 = vunpack.c.0.s8 %v1348
        %v1350 = vlaneseq
        %v1351 = vshrl.u32 %v1350, 7
        %v1352 = vsub.s32 %v1349, %v1351
        %v1353 = vrot.slane %v1339, %v1352
        %v1354 = vcombine.high %v1330, 0.0
        %v1355 = vcombine.high %v1337, 0.0
        %v1356 = vcombine.high %v1346, 0.0
        %v1357 = vcombine.high %v1353, 0.0
        %1359 = vrot.lane.b32.xlu0 %v1354, 16
        %v1360 = vpop.permute.xlu0 %1359
        %1363 = vrot.lane.b32.xlu0 %v1337, 32
        %v1364 = vpop.permute.xlu0 %1363
        %1367 = vrot.lane.b32.xlu0 %v1355, 48
        %v1368 = vpop.permute.xlu0 %1367
        %1371 = vrot.lane.b32.xlu0 %v1346, 64
        %v1372 = vpop.permute.xlu0 %1371
        %1375 = vrot.lane.b32.xlu0 %v1356, 80
        %v1376 = vpop.permute.xlu0 %1375
        %1379 = vrot.lane.b32.xlu0 %v1353, 96
        %v1380 = vpop.permute.xlu0 %1379
        %1383 = vrot.lane.b32.xlu0 %v1357, 112
        %v1384 = vpop.permute.xlu0 %1383
        %v1386 = vsel %vm433, %v1330, %v1360
        %v1387 = vsel %vm435, %v1386, %v1364
        %v1388 = vsel %vm437, %v1387, %v1368
        %v1389 = vsel %vm439, %v1388, %v1372
        %v1390 = vsel %vm441, %v1389, %v1376
        %v1391 = vsel %vm443, %v1390, %v1380
        %v1392 = vsel %vm445, %v1391, %v1384
        %1393 = vst [vmem:[#allocation3 + $0x20] sm:$0xf] %v1392
        %v1394 = vld [vmem:[#allocation7] sm:$0xf]
        %v1395 = vld [vmem:[#allocation3] sm:$0xff]
        %v1396 = vld [vmem:[#allocation3 + $0x8] sm:$0xff]
        %v1397 = vld [vmem:[#allocation3 + $0x10] sm:$0xff]
        %v1398 = vld [vmem:[#allocation3 + $0x18] sm:$0xff]
        %v1399 = vld [vmem:[#allocation3 + $0x20] sm:$0xf]
        %vm1400 = vcmask 293888
        %v1402 = vsel %vm1400, %v1394, 0
        %vm1404 = vcmask 1043456
        %v1406 = vsel %vm1404, %v1399, 0
        %1408 = vmatprep.subr.mxu0 0.0
        %1409 = vmatpush1.msra.mxu0 0.0
        %1410 = vmatprep.subr.mxu0 0.0
        %1411 = vmatpush1.msra.mxu0 0.0
        %1412 = vmatprep.subr.mxu0 0.0
        %1413 = vmatpush1.msra.mxu0 0.0
        %1414 = vmatprep.subr.mxu0 0.0
        %1415 = vmatpush1.msra.mxu0 0.0
        %1416 = vmatprep.subr.mxu0 0.0
        %1417 = vmatpush1.msra.mxu0 0.0
        %1418 = vmatprep.subr.mxu0 0.0
        %1419 = vmatpush1.msra.mxu0 0.0
        %1420 = vmatprep.subr.mxu0 0.0
        %1421 = vmatpush1.msra.mxu0 0.0
        %1422 = vmatprep.subr.mxu0 0.0
        %1423 = vmatpush1.msra.mxu0 0.0
        %1424 = vmatprep.subr.mxu0 0.0
        %1425 = vmatpush1.msra.mxu0 0.0
        %1426 = vmatprep.subr.mxu0 0.0
        %1427 = vmatpush1.msra.mxu0 0.0
        %1428 = vmatprep.subr.mxu0 0.0
        %1429 = vmatpush1.msra.mxu0 0.0
        %1430 = vmatprep.subr.mxu0 0.0
        %1431 = vmatpush1.msra.mxu0 %v1406
        %1432 = vmatprep.subr.mxu0 0.0
        %1433 = vmatpush1.msra.mxu0 %v1398
        %1434 = vmatprep.subr.mxu0 0.0
        %1435 = vmatpush1.msra.mxu0 %v1397
        %1436 = vmatprep.subr.mxu0 0.0
        %1437 = vmatpush1.msra.mxu0 %v1396
        %1438 = vmatprep.subr.mxu0 0.0
        %1439 = vmatpush1.msra.mxu0 %v1395
        %1440 = vmatprep.subr.mxu0 0.0
        %1441 = vmatpush2.msra.mxu0 0.0
        %1442 = vmatprep.subr.mxu0 0.0
        %1443 = vmatpush2.msra.mxu0 0.0
        %1444 = vmatprep.subr.mxu0 0.0
        %1445 = vmatpush2.msra.mxu0 0.0
        %1446 = vmatprep.subr.mxu0 0.0
        %1447 = vmatpush2.msra.mxu0 0.0
        %1448 = vmatprep.subr.mxu0 0.0
        %1449 = vmatpush2.msra.mxu0 0.0
        %1450 = vmatprep.subr.mxu0 0.0
        %1451 = vmatpush2.msra.mxu0 0.0
        %1452 = vmatprep.subr.mxu0 0.0
        %1453 = vmatpush2.msra.mxu0 0.0
        %1454 = vmatprep.subr.mxu0 0.0
        %1455 = vmatpush2.msra.mxu0 0.0
        %1456 = vmatprep.subr.mxu0 0.0
        %1457 = vmatpush2.msra.mxu0 0.0
        %1458 = vmatprep.subr.mxu0 0.0
        %1459 = vmatpush2.msra.mxu0 0.0
        %1460 = vmatprep.subr.mxu0 0.0
        %1461 = vmatpush2.msra.mxu0 0.0
        %1462 = vmatprep.subr.mxu0 0.0
        %1463 = vmatpush2.msra.mxu0 0.0
        %1464 = vmatprep.subr.mxu0 0.0
        %1465 = vmatpush2.msra.mxu0 0.0
        %1466 = vmatprep.subr.mxu0 0.0
        %1467 = vmatpush2.msra.mxu0 0.0
        %1468 = vmatprep.subr.mxu0 0.0
        %1469 = vmatpush2.msra.mxu0 0.0
        %1470 = vmatprep.subr.mxu0 0.0
        %1471 = vmatpush2.msra.mxu0 0.0
        %1472 = vmatprep.mubr.f32.mxu0 0.0
        %1473 = vmatmul.mubr.f32.gmra.mxu0 %v1402
        %v1474 = vpop.f32.mrf.mxu0
        %v1475 = vadd.f32 0.0, %v1474
        %v1476 = vpop.f32.mrf.mxu0
        %1477 = vdwg.mxu0
        %1478 = vst [vmem:[%s218] sm:$0xf] %v1475
        %v1479 = vsel %vm1404, %v1475, 0.0
        %1480 = vadd.xlane.f32.xlu0 %v1479
        %v1481 = vpop.xlane.xlu0 %1480
        %vm1482 = vcmask 3072
        %1483 = vst.msk [vmem:[%s236] sm:$0xf] %vm1482, %v1481
        %v1484 = vmul.f32 %v1475, %v1475
        %v1485 = vsel %vm1404, %v1484, 0.0
        %1486 = vadd.xlane.f32.xlu0 %v1485
        %v1487 = vpop.xlane.xlu0 %1486
        %vm1488 = vcmask 11272
        %1489 = vst.msk [vmem:[%s236] sm:$0xf] %vm1488, %v1487
        %s1490 = sand.u32 %s91, 1
        %s1491 = scalar_lea.sflag [#allocation6], %s1490
        %s1492 = sand.u32 %s91, 1
        %s1493 = smul.addr %s1492, 4
        %s1494 = scalar_lea.vmem [#allocation9], %s1493
        %p1495 = scmp.lt.s32.totalorder %s26, 1
        %s1496 = scalar_select %p1495, %s26, 1
        %p1497 = scmp.lt.s32.totalorder %s27, 1
        %s1498 = scalar_select %p1497, %s27, 1
        %s1499 = smul.addr %s1496, 2
        %s1500 = sadd.s32 %s1498, %s1499
        %s1501 = smul.addr %s1500, 4
        %s1502 = scalar_lea.vmem %s3, %s1501
        // Predicated region
        $region41: #{tpu_custom_call.1} parent=27 // pred_check
          %p1503 = pneg %p101
        $region42: #{tpu_custom_call.1} parent=27 // pred_check_branch
          %1505 = sbr.rel (%p1503) target = $region44
        $region43: #{tpu_custom_call.1} parent=27 // pred_region
          %s1507 = ssub.s32 64, 64
          %1508 = vsyncadd %s1491, %s1507
          %s1509 = smul.addr %s26, 2
          %s1510 = sadd.s32 %s27, %s1509
          %s1511 = smul.addr %s1510, 64
          %s1512 = scalar_lea.hbm %s2, %s1511
          %s1514 = sshll.u32 %s1494, 4
          %s1515 = int_to_ptr.vmem [resolvable:$true] %s1514
          %1517 = dma.vmem_to_hbm [thread:$0]  %s1515, 64, %s1512, %s1491
        $region44: #{tpu_custom_call.1} parent=27 // pred_fallthru
          _
        // Predicated region
        $region45: #{tpu_custom_call.1} parent=27 // pred_check
          %p1518 = pneg %p129
        $region46: #{tpu_custom_call.1} parent=27 // pred_check_branch
          %1520 = sbr.rel (%p1518) target = $region48
        $region47: #{tpu_custom_call.1} parent=27 // pred_region
          _
        $region48: #{tpu_custom_call.1} parent=27 // pred_fallthru
          _
      $region28: #{tpu_custom_call.1} parent=5 // pred_fallthru
        _
      %p1521 = scmp.le.s32.totalorder 2, %s17
      // Predicated region
      $region49: #{tpu_custom_call.1} parent=5 // pred_check
        %p1522 = pneg %p1521
      $region50: #{tpu_custom_call.1} parent=5 // pred_check_branch
        %1524 = sbr.rel (%p1522) target = $region52
      $region51: #{tpu_custom_call.1} parent=5 // pred_region
        %s1525 = ssub.s32 %s17, 2
        // Predicated region
        $region53: #{tpu_custom_call.1} parent=51 // pred_check
          %p1526 = pneg %p107
        $region54: #{tpu_custom_call.1} parent=51 // pred_check_branch
          %1528 = sbr.rel (%p1526) target = $region56
        $region55: #{tpu_custom_call.1} parent=51 // pred_region
          %s1529 = sand.u32 %s92, 1
          %s1530 = scalar_lea.sflag [#allocation6], %s1529
          %s1531 = sand.u32 %s92, 1
          %s1532 = smul.addr %s1531, 4
          %s1533 = scalar_lea.vmem [#allocation9], %s1532
          %1534 = dma.done %s1530, 64
        $region56: #{tpu_custom_call.1} parent=51 // pred_fallthru
          _
        // Predicated region
        $region57: #{tpu_custom_call.1} parent=51 // pred_check
          %p1535 = pneg %p135
        $region58: #{tpu_custom_call.1} parent=51 // pred_check_branch
          %1537 = sbr.rel (%p1535) target = $region60
        $region59: #{tpu_custom_call.1} parent=51 // pred_region
          %p1538 = scmp.lt.s32.totalorder %s28, 1
          %s1539 = scalar_select %p1538, %s28, 1
          %p1540 = scmp.lt.s32.totalorder %s29, 1
          %s1541 = scalar_select %p1540, %s29, 1
          %s1542 = smul.addr %s1539, 2
          %s1543 = sadd.s32 %s1541, %s1542
          %s1544 = smul.addr %s1543, 4
          %s1545 = scalar_lea.vmem %s3, %s1544
        $region60: #{tpu_custom_call.1} parent=51 // pred_fallthru
          _
      $region52: #{tpu_custom_call.1} parent=5 // pred_fallthru
        _
    $region6: #{tpu_custom_call.1} parent=1 // loop_footer
      %s21 = sadd.s32 1, %s17
    $region7: #{tpu_custom_call.1} parent=1 // loop_footer_branch
      %16 = sbr.rel target = $region3
    $region8: #{tpu_custom_call.1} parent=1 // loop_exit
      _
    %1546 = vsyncpa [#allocation5], 1
    %s1547 = scalar_lea.sflag [#allocation5], 1
    %1548 = vsyncpa %s1547, 1
    %1549 = vsyncpa [#allocation8], 1
    %1550 = vsyncpa [#allocation6], 1
    %s1551 = scalar_lea.sflag [#allocation6], 1
    %1552 = vsyncpa %s1551, 1

</llo_original>
